<compile_context>
chip_gen: v5e
topology: v5e:2x2
jax: 0.10.0
libtpu: 0.0.40
codegen_flags: <defaults>
</compile_context>

<pallas_src>
import functools
import math

import jax
import jax.numpy as jnp
from jax.experimental import pallas as pl
from jax.experimental.pallas import tpu as pltpu

# ----------------------------- model config (small, synthetic) -----------------
VOCAB_SIZE   = 128
HIDDEN_SIZE  = 32
NUM_LAYERS   = 2
NUM_HEADS    = 4
HEAD_DIM     = HIDDEN_SIZE // NUM_HEADS
INTERMEDIATE = 64
MAX_POS      = 16
NUM_CLASSES  = 3
DROPOUT_RATE = 0.1          # inference: identity (and its output is unused anyway)
LN_EPS       = 1e-12

# row layout of the packed "misc" operand: (MISC_ROWS, 128) f32
ROW_POS    = 0                   # rows [0, MAX_POS): pos_emb + type_emb[0]
ROW_EMB_G  = MAX_POS             # embedding LayerNorm gamma
ROW_EMB_B  = MAX_POS + 1         # embedding LayerNorm beta
ROW_POOL_B = MAX_POS + 2         # pooler dense bias
MISC_ROWS  = MAX_POS + 8         # padded to a multiple of 8 sublanes

# row layout of the per-layer packed vector operand: (NUM_LAYERS, 8, 128) f32
(LROW_BQKV, LROW_BO, LROW_LN1G, LROW_LN1B,
 LROW_B1, LROW_B2, LROW_LN2G, LROW_LN2B) = range(8)


def _shift(n):
    assert n > 0 and (n & (n - 1)) == 0, "power-of-two sizes expected"
    return n.bit_length() - 1


# ----------------------------- fused forward kernel ----------------------------
def _bert_fused_kernel(B, S, ids_ref, mask_ref, wemb_ref, misc_ref, lvec_ref,
                       wqkv_ref, wo_ref, w1_ref, w2_ref, o_ref):
    H, NH, D, INTER = HIDDEN_SIZE, NUM_HEADS, HEAD_DIM, INTERMEDIATE
    BS = B * S                       # batch folded into sublanes
    R = NH * BS                      # (head, token) packed rows for batched attention
    scale = 1.0 / math.sqrt(D)

    def ln(x, g, b):
        mean = jnp.mean(x, axis=-1, keepdims=True)
        var = jnp.mean(jnp.square(x - mean), axis=-1, keepdims=True)
        return (x - mean) * jax.lax.rsqrt(var + LN_EPS) * g + b

    def mm(a, w):                    # bf16 MXU operands, f32 accumulation
        return jnp.dot(a.astype(w.dtype), w, preferred_element_type=jnp.float32)

    misc = misc_ref[...]                                     # (MISC_ROWS, 128) f32
    pos_type = misc[0:S, 0:H]                                # (S, H)
    emb_g  = misc[ROW_EMB_G:ROW_EMB_G + 1, 0:H]
    emb_b  = misc[ROW_EMB_B:ROW_EMB_B + 1, 0:H]
    pool_b = misc[ROW_POOL_B:ROW_POOL_B + 1, 0:H]

    # ---- embeddings: one-hot gather on the MXU (f32 keeps embedding rows bit-exact) ----
    ids = ids_ref[...]                                       # (BS, 1) int32
    onehot = (ids == jax.lax.broadcasted_iota(jnp.int32, (BS, VOCAB_SIZE), 1)
              ).astype(jnp.float32)                          # (BS, VOCAB)
    x = jnp.dot(onehot, wemb_ref[...], preferred_element_type=jnp.float32)   # (BS, H)
    x = ln(x + jnp.concatenate([pos_type] * B, axis=0), emb_g, emb_b)

    # ---- constants hoisted out of the layer loop ----
    # combined attention bias (single -1e4 term, per review): 0 iff the key is in the
    # same sample AND attended; masks both padding and the folded cross-sample blocks.
    key_valid = mask_ref[...] > 0.5                          # (1, BS)
    q_idx = jax.lax.broadcasted_iota(jnp.int32, (BS, BS), 0)
    k_idx = jax.lax.broadcasted_iota(jnp.int32, (BS, BS), 1)
    same_sample = (jnp.right_shift(q_idx, _shift(S)) ==
                   jnp.right_shift(k_idx, _shift(S)))
    bias = jnp.where(jnp.logical_and(same_sample, key_valid),
                     0.0, -10000.0).astype(jnp.float32)      # (BS, BS)
    bias_heads = jnp.concatenate([bias] * NH, axis=0)        # (R, BS)
    # head-selection mask: packed row h*BS+t keeps only head h's D hidden lanes.
    row_head = jnp.right_shift(
        jax.lax.broadcasted_iota(jnp.int32, (R, H), 0), _shift(BS))
    col_head = jnp.right_shift(
        jax.lax.broadcasted_iota(jnp.int32, (R, H), 1), _shift(D))
    head_sel = (row_head == col_head).astype(jnp.float32)    # (R, H)

    # ---- transformer encoder layers (static unroll; fine at L=2) ----
    # TODO(synk): for L >> 4, move layers onto an "arbitrary" grid axis and stream weights.
    for l in range(NUM_LAYERS):
        lv = lvec_ref[l]                                     # (8, 128) packed vectors
        bqkv = lv[LROW_BQKV:LROW_BQKV + 1, 0:3 * H]
        bo   = lv[LROW_BO:LROW_BO + 1, 0:H]
        ln1g = lv[LROW_LN1G:LROW_LN1G + 1, 0:H]
        ln1b = lv[LROW_LN1B:LROW_LN1B + 1, 0:H]
        b1   = lv[LROW_B1:LROW_B1 + 1, 0:INTER]
        b2   = lv[LROW_B2:LROW_B2 + 1, 0:H]
        ln2g = lv[LROW_LN2G:LROW_LN2G + 1, 0:H]
        ln2b = lv[LROW_LN2B:LROW_LN2B + 1, 0:H]

        # fused QKV projection: one (BS,H)x(H,3H) MXU push
        qkv = mm(x, wqkv_ref[l]) + bqkv                      # (BS, 3H) f32
        q = qkv[:, 0:H]
        k = qkv[:, H:2 * H]
        v = qkv[:, 2 * H:3 * H]

        # all heads in ONE QK^T: replicate Q to (R, H) packed rows and zero the lanes of
        # other heads so the H-wide contraction only sees head h's D dims.
        q_big = jnp.concatenate([q] * NH, axis=0) * head_sel           # (R, H)
        s = jax.lax.dot_general(q_big, k, (((1,), (1,)), ((), ())),
                                preferred_element_type=jnp.float32) * scale
        s = s + bias_heads                                   # (R, BS)
        m = jnp.max(s, axis=-1, keepdims=True)
        p = jnp.exp(s - m)
        p = p * pl.reciprocal(jnp.sum(p, axis=-1, keepdims=True), approx=True)
        # one PV matmul for all heads; head_sel discards the wrong-head lanes.
        ctx = jnp.dot(p, v, preferred_element_type=jnp.float32) * head_sel   # (R, H)
        # merge heads: fold the NH packed row-blocks back to (BS, H) with aligned
        # sublane slices (offsets are multiples of 8) + adds.
        merged = ctx[0:BS, :]
        for h in range(1, NH):
            merged = merged + ctx[h * BS:(h + 1) * BS, :]
        # single merged output projection (one MXU push instead of NH partials)
        x = ln(x + mm(merged, wo_ref[l]) + bo, ln1g, ln1b)

        # feed-forward
        # TODO(synk): BERT uses exact (erf) GELU; tanh-approx keeps a guaranteed lowering.
        ffn = jax.nn.gelu(mm(x, w1_ref[l]) + b1, approximate=True)
        x = ln(x + mm(ffn, w2_ref[l]) + b2, ln2g, ln2b)

    # ---- pooler + module return value ----
    cls = jnp.concatenate([x[b * S:b * S + 1, :] for b in range(B)], axis=0)   # (B, H)
    pooled = jnp.tanh(mm(cls, wo_ref[NUM_LAYERS]) + pool_b)  # BERT pooler: tanh(dense(CLS))
    # dropout(pooled) is identity at eval (output unused); classifier(pooled) is computed-
    # then-discarded in the PyTorch forward -> dead matmul dropped here.
    o_ref[...] = jnp.tanh(pooled)                            # proba = tanh(pooled_output)


# ----------------------------- wrapper ------------------------------------------
def bert_classifier_forward(packed, input_ids, attention_mask):
    """Whole forward (embedding gather -> 2 encoder layers -> pooler -> tanh) in ONE
    single-step pallas_call; every operand is a whole-array VMEM block (no grid)."""
    B, S = input_ids.shape
    assert S <= MAX_POS
    ids2 = input_ids.astype(jnp.int32).reshape(B * S, 1)
    mask2 = attention_mask.astype(jnp.float32).reshape(1, B * S)

    vmem = pl.BlockSpec(memory_space=pltpu.MemorySpace.VMEM)
    return pl.pallas_call(
        functools.partial(_bert_fused_kernel, B, S),
        out_shape=jax.ShapeDtypeStruct((B, HIDDEN_SIZE), jnp.float32),
        in_specs=[vmem] * 9,
        out_specs=vmem,
    )(ids2, mask2, packed["word_emb"], packed["misc"], packed["lvec"],
      packed["wqkv"], packed["wo"], packed["w1"], packed["w2"])


# ----------------------------- parameter construction ---------------------------
def init_params(key):
    def nrm(k, shape, std=0.02):
        return jax.random.normal(k, shape, jnp.float32) * std

    keys = iter(jax.random.split(key, 8 + NUM_LAYERS * 16))
    p = {
        "word_emb": nrm(next(keys), (VOCAB_SIZE, HIDDEN_SIZE)),
        "pos_emb":  nrm(next(keys), (MAX_POS, HIDDEN_SIZE)),
        "type_emb": nrm(next(keys), (2, HIDDEN_SIZE)),
        "emb_ln_g": jnp.ones((HIDDEN_SIZE,), jnp.float32),
        "emb_ln_b": jnp.zeros((HIDDEN_SIZE,), jnp.float32),
        "layers": [],
    }
    for _ in range(NUM_LAYERS):
        lyr = {
            "wq": nrm(next(keys), (HIDDEN_SIZE, HIDDEN_SIZE)),
            "bq": jnp.zeros((HIDDEN_SIZE,), jnp.float32),
            "wk": nrm(next(keys), (HIDDEN_SIZE, HIDDEN_SIZE)),
            "bk": jnp.zeros((HIDDEN_SIZE,), jnp.float32),
            "wv": nrm(next(keys), (HIDDEN_SIZE, HIDDEN_SIZE)),
            "bv": jnp.zeros((HIDDEN_SIZE,), jnp.float32),
            "wo": nrm(next(keys), (HIDDEN_SIZE, HIDDEN_SIZE)),
            "bo": jnp.zeros((HIDDEN_SIZE,), jnp.float32),
            "ln1_g": jnp.ones((HIDDEN_SIZE,), jnp.float32),
            "ln1_b": jnp.zeros((HIDDEN_SIZE,), jnp.float32),
            "w1": nrm(next(keys), (HIDDEN_SIZE, INTERMEDIATE)),
            "b1": jnp.zeros((INTERMEDIATE,), jnp.float32),
            "w2": nrm(next(keys), (INTERMEDIATE, HIDDEN_SIZE)),
            "b2": jnp.zeros((HIDDEN_SIZE,), jnp.float32),
            "ln2_g": jnp.ones((HIDDEN_SIZE,), jnp.float32),
            "ln2_b": jnp.zeros((HIDDEN_SIZE,), jnp.float32),
        }
        p["layers"].append(lyr)
    p["pool_w"] = nrm(next(keys), (HIDDEN_SIZE, HIDDEN_SIZE))
    p["pool_b"] = jnp.zeros((HIDDEN_SIZE,), jnp.float32)
    # classifier params kept for init parity (xavier_normal_); its output is discarded by
    # the PyTorch forward so it never enters the kernel.
    xav_std = math.sqrt(2.0 / (HIDDEN_SIZE + NUM_CLASSES))
    p["cls_w"] = jax.random.normal(next(keys), (HIDDEN_SIZE, NUM_CLASSES),
                                   jnp.float32) * xav_std
    p["cls_b"] = jnp.zeros((NUM_CLASSES,), jnp.float32)
    return p


def pack_params(p):
    """One-time host-side packing: fused QKV, stacked bf16 weights, all tiny per-layer
    vectors in one (L, 8, 128) f32 operand, pos+type / emb-LN / pooler-bias in one
    (MISC_ROWS, 128) operand, pooler dense stacked as layer L of the out-proj stack."""
    H, INTER = HIDDEN_SIZE, INTERMEDIATE
    bf16 = jnp.bfloat16
    layers = p["layers"]

    misc = jnp.zeros((MISC_ROWS, 128), jnp.float32)
    misc = misc.at[ROW_POS:ROW_POS + MAX_POS, 0:H].set(
        p["pos_emb"] + p["type_emb"][0][None, :])            # token_type_ids == 0
    misc = misc.at[ROW_EMB_G, 0:H].set(p["emb_ln_g"])
    misc = misc.at[ROW_EMB_B, 0:H].set(p["emb_ln_b"])
    misc = misc.at[ROW_POOL_B, 0:H].set(p["pool_b"])

    def layer_vec(l):
        v = jnp.zeros((8, 128), jnp.float32)
        v = v.at[LROW_BQKV, 0:3 * H].set(jnp.concatenate([l["bq"], l["bk"], l["bv"]]))
        v = v.at[LROW_BO, 0:H].set(l["bo"])
        v = v.at[LROW_LN1G, 0:H].set(l["ln1_g"])
        v = v.at[LROW_LN1B, 0:H].set(l["ln1_b"])
        v = v.at[LROW_B1, 0:INTER].set(l["b1"])
        v = v.at[LROW_B2, 0:H].set(l["b2"])
        v = v.at[LROW_LN2G, 0:H].set(l["ln2_g"])
        v = v.at[LROW_LN2B, 0:H].set(l["ln2_b"])
        return v

    return {
        "word_emb": p["word_emb"],                            # f32: exact one-hot gather
        "misc": misc,                                         # (MISC_ROWS, 128) f32
        "lvec": jnp.stack([layer_vec(l) for l in layers]),    # (L, 8, 128) f32
        "wqkv": jnp.stack([jnp.concatenate([l["wq"], l["wk"], l["wv"]], axis=1)
                           for l in layers]).astype(bf16),    # (L, H, 3H)
        "wo": jnp.stack([l["wo"] for l in layers]
                        + [p["pool_w"]]).astype(bf16),        # (L+1, H, H); last = pooler
        "w1": jnp.stack([l["w1"] for l in layers]).astype(bf16),   # (L, H, INTER)
        "w2": jnp.stack([l["w2"] for l in layers]).astype(bf16),   # (L, INTER, H)
    }


# ----------------------------- main -----------------------------------------------
if __name__ == "__main__":
    key = jax.random.PRNGKey(0)
    k_param, k_ids = jax.random.split(key)

    B, S = 2, 8
    params = init_params(k_param)
    packed = pack_params(params)
    input_ids = jax.random.randint(k_ids, (B, S), 0, VOCAB_SIZE, dtype=jnp.int32)
    attention_mask = jnp.ones((B, S), dtype=jnp.int32).at[1, 6:].set(0)  # ragged mask

    proba = bert_classifier_forward(packed, input_ids, attention_mask)
    proba = jax.block_until_ready(proba)

    assert proba.shape == (B, HIDDEN_SIZE)
    assert bool(jnp.all(jnp.isfinite(proba)))
    assert bool(jnp.all(jnp.abs(proba) <= 1.0))     # tanh range
    print("KERNEL_OK")
</pallas_src>

<mosaic_0001>
module attributes {stable_mosaic.version = 11 : i64} {
  func.func @_bert_fused_kernel(%arg0: memref<16x1xi32, #tpu.memory_space<vmem>>, %arg1: memref<1x16xf32, #tpu.memory_space<vmem>>, %arg2: memref<128x32xf32, #tpu.memory_space<vmem>>, %arg3: memref<24x128xf32, #tpu.memory_space<vmem>>, %arg4: memref<2x8x128xf32, #tpu.memory_space<vmem>>, %arg5: memref<2x32x96xbf16, #tpu.memory_space<vmem>>, %arg6: memref<3x32x32xbf16, #tpu.memory_space<vmem>>, %arg7: memref<2x32x64xbf16, #tpu.memory_space<vmem>>, %arg8: memref<2x64x32xbf16, #tpu.memory_space<vmem>>, %arg9: memref<2x32xf32, #tpu.memory_space<vmem>>) attributes {dimension_semantics = [], scalar_prefetch = 0 : i64, scratch_operands = 0 : i64, tpu.core_type = #tpu.core_type<tc>} {
    %c0 = arith.constant 0 : index
    %c0_0 = arith.constant 0 : index
    %0 = vector.load %arg3[%c0, %c0_0] : memref<24x128xf32, #tpu.memory_space<vmem>>, vector<24x128xf32>
    %1 = vector.extract_strided_slice %0 {offsets = [0, 0], sizes = [8, 32], strides = [1, 1]} : vector<24x128xf32> to vector<8x32xf32>
    %2 = vector.extract_strided_slice %0 {offsets = [16, 0], sizes = [1, 32], strides = [1, 1]} : vector<24x128xf32> to vector<1x32xf32>
    %3 = vector.extract_strided_slice %0 {offsets = [17, 0], sizes = [1, 32], strides = [1, 1]} : vector<24x128xf32> to vector<1x32xf32>
    %4 = vector.extract_strided_slice %0 {offsets = [18, 0], sizes = [1, 32], strides = [1, 1]} : vector<24x128xf32> to vector<1x32xf32>
    %c0_1 = arith.constant 0 : index
    %c0_2 = arith.constant 0 : index
    %5 = vector.load %arg0[%c0_1, %c0_2] : memref<16x1xi32, #tpu.memory_space<vmem>>, vector<16x1xi32>
    %6 = tpu.iota {dimensions = array<i32: 1>} : vector<16x128xi32>
    %7 = vector.broadcast %5 : vector<16x1xi32> to vector<16x128xi32>
    %8 = arith.cmpi eq, %7, %6 : vector<16x128xi32>
    %9 = arith.extui %8 : vector<16x128xi1> to vector<16x128xi32>
    %10 = arith.sitofp %9 : vector<16x128xi32> to vector<16x128xf32>
    %c0_3 = arith.constant 0 : index
    %c0_4 = arith.constant 0 : index
    %11 = vector.load %arg2[%c0_3, %c0_4] : memref<128x32xf32, #tpu.memory_space<vmem>>, vector<128x32xf32>
    %cst = arith.constant dense<0.000000e+00> : vector<16x32xf32>
    %12 = tpu.matmul %10, %11, %cst {dimension_numbers = #tpu.dot_dimension_numbers<[1], [0], [0], [1], [0, 0, 1, 1], [], []>} : vector<16x128xf32>, vector<128x32xf32>, vector<16x32xf32> -> vector<16x32xf32>
    %13 = tpu.concatenate %1, %1 in 0 : vector<8x32xf32>, vector<8x32xf32> -> vector<16x32xf32>
    %14 = arith.addf %12, %13 : vector<16x32xf32>
    %cst_5 = arith.constant dense<0.000000e+00> : vector<16xf32>
    %15 = vector.multi_reduction <add>, %14, %cst_5 [1] : vector<16x32xf32> to vector<16xf32>
    %16 = vector.shape_cast %15 : vector<16xf32> to vector<16x1xf32>
    %cst_6 = arith.constant 3.200000e+01 : f32
    %17 = vector.broadcast %cst_6 : f32 to vector<16x1xf32>
    %18 = arith.divf %16, %17 : vector<16x1xf32>
    %19 = vector.broadcast %18 : vector<16x1xf32> to vector<16x32xf32>
    %20 = arith.subf %14, %19 : vector<16x32xf32>
    %21 = arith.mulf %20, %20 : vector<16x32xf32>
    %cst_7 = arith.constant dense<0.000000e+00> : vector<16xf32>
    %22 = vector.multi_reduction <add>, %21, %cst_7 [1] : vector<16x32xf32> to vector<16xf32>
    %23 = vector.shape_cast %22 : vector<16xf32> to vector<16x1xf32>
    %cst_8 = arith.constant 3.200000e+01 : f32
    %24 = vector.broadcast %cst_8 : f32 to vector<16x1xf32>
    %25 = arith.divf %23, %24 : vector<16x1xf32>
    %26 = vector.broadcast %18 : vector<16x1xf32> to vector<16x32xf32>
    %27 = arith.subf %14, %26 : vector<16x32xf32>
    %cst_9 = arith.constant 9.99999996E-13 : f32
    %28 = vector.broadcast %cst_9 : f32 to vector<16x1xf32>
    %29 = arith.addf %25, %28 : vector<16x1xf32>
    %30 = math.rsqrt %29 : vector<16x1xf32>
    %31 = vector.broadcast %30 : vector<16x1xf32> to vector<16x32xf32>
    %32 = arith.mulf %27, %31 : vector<16x32xf32>
    %33 = vector.broadcast %2 : vector<1x32xf32> to vector<16x32xf32>
    %34 = arith.mulf %32, %33 : vector<16x32xf32>
    %35 = vector.broadcast %3 : vector<1x32xf32> to vector<16x32xf32>
    %36 = arith.addf %34, %35 : vector<16x32xf32>
    %c0_10 = arith.constant 0 : index
    %c0_11 = arith.constant 0 : index
    %37 = vector.load %arg1[%c0_10, %c0_11] : memref<1x16xf32, #tpu.memory_space<vmem>>, vector<1x16xf32>
    %cst_12 = arith.constant 5.000000e-01 : f32
    %38 = vector.broadcast %cst_12 : f32 to vector<1x16xf32>
    %39 = arith.cmpf ogt, %37, %38 : vector<1x16xf32>
    %40 = tpu.iota {dimensions = array<i32: 0>} : vector<16x16xi32>
    %41 = tpu.iota {dimensions = array<i32: 1>} : vector<16x16xi32>
    %c3_i32 = arith.constant 3 : i32
    %42 = vector.broadcast %c3_i32 : i32 to vector<16x16xi32>
    %43 = arith.shrsi %40, %42 : vector<16x16xi32>
    %c3_i32_13 = arith.constant 3 : i32
    %44 = vector.broadcast %c3_i32_13 : i32 to vector<16x16xi32>
    %45 = arith.shrsi %41, %44 : vector<16x16xi32>
    %46 = arith.cmpi eq, %43, %45 : vector<16x16xi32>
    %47 = vector.broadcast %39 : vector<1x16xi1> to vector<16x16xi1>
    %48 = arith.andi %46, %47 : vector<16x16xi1>
    %cst_14 = arith.constant 0.000000e+00 : f32
    %cst_15 = arith.constant -1.000000e+04 : f32
    %49 = vector.broadcast %cst_14 : f32 to vector<16x16xf32>
    %50 = vector.broadcast %cst_15 : f32 to vector<16x16xf32>
    %51 = arith.select %48, %49, %50 : vector<16x16xi1>, vector<16x16xf32>
    %52 = tpu.concatenate %51, %51, %51, %51 in 0 : vector<16x16xf32>, vector<16x16xf32>, vector<16x16xf32>, vector<16x16xf32> -> vector<64x16xf32>
    %53 = tpu.iota {dimensions = array<i32: 0>} : vector<64x32xi32>
    %c4_i32 = arith.constant 4 : i32
    %54 = vector.broadcast %c4_i32 : i32 to vector<64x32xi32>
    %55 = arith.shrsi %53, %54 : vector<64x32xi32>
    %56 = tpu.iota {dimensions = array<i32: 1>} : vector<64x32xi32>
    %c3_i32_16 = arith.constant 3 : i32
    %57 = vector.broadcast %c3_i32_16 : i32 to vector<64x32xi32>
    %58 = arith.shrsi %56, %57 : vector<64x32xi32>
    %59 = arith.cmpi eq, %55, %58 : vector<64x32xi32>
    %60 = arith.extui %59 : vector<64x32xi1> to vector<64x32xi32>
    %61 = arith.sitofp %60 : vector<64x32xi32> to vector<64x32xf32>
    %c0_17 = arith.constant 0 : index
    %c0_18 = arith.constant 0 : index
    %c0_19 = arith.constant 0 : index
    %62 = vector.load %arg4[%c0_17, %c0_18, %c0_19] : memref<2x8x128xf32, #tpu.memory_space<vmem>>, vector<1x8x128xf32>
    %63 = vector.shape_cast %62 : vector<1x8x128xf32> to vector<8x128xf32>
    %64 = vector.extract_strided_slice %63 {offsets = [0, 0], sizes = [1, 96], strides = [1, 1]} : vector<8x128xf32> to vector<1x96xf32>
    %65 = vector.extract_strided_slice %63 {offsets = [1, 0], sizes = [1, 32], strides = [1, 1]} : vector<8x128xf32> to vector<1x32xf32>
    %66 = vector.extract_strided_slice %63 {offsets = [2, 0], sizes = [1, 32], strides = [1, 1]} : vector<8x128xf32> to vector<1x32xf32>
    %67 = vector.extract_strided_slice %63 {offsets = [3, 0], sizes = [1, 32], strides = [1, 1]} : vector<8x128xf32> to vector<1x32xf32>
    %68 = vector.extract_strided_slice %63 {offsets = [4, 0], sizes = [1, 64], strides = [1, 1]} : vector<8x128xf32> to vector<1x64xf32>
    %69 = vector.extract_strided_slice %63 {offsets = [5, 0], sizes = [1, 32], strides = [1, 1]} : vector<8x128xf32> to vector<1x32xf32>
    %70 = vector.extract_strided_slice %63 {offsets = [6, 0], sizes = [1, 32], strides = [1, 1]} : vector<8x128xf32> to vector<1x32xf32>
    %71 = vector.extract_strided_slice %63 {offsets = [7, 0], sizes = [1, 32], strides = [1, 1]} : vector<8x128xf32> to vector<1x32xf32>
    %c0_20 = arith.constant 0 : index
    %c0_21 = arith.constant 0 : index
    %c0_22 = arith.constant 0 : index
    %72 = vector.load %arg5[%c0_20, %c0_21, %c0_22] : memref<2x32x96xbf16, #tpu.memory_space<vmem>>, vector<1x32x96xbf16>
    %73 = vector.shape_cast %72 : vector<1x32x96xbf16> to vector<32x96xbf16>
    %74 = arith.truncf %36 : vector<16x32xf32> to vector<16x32xbf16>
    %cst_23 = arith.constant dense<0.000000e+00> : vector<16x96xf32>
    %75 = tpu.matmul %74, %73, %cst_23 {dimension_numbers = #tpu.dot_dimension_numbers<[1], [0], [0], [1], [0, 0, 1, 1], [], []>} : vector<16x32xbf16>, vector<32x96xbf16>, vector<16x96xf32> -> vector<16x96xf32>
    %76 = vector.broadcast %64 : vector<1x96xf32> to vector<16x96xf32>
    %77 = arith.addf %75, %76 : vector<16x96xf32>
    %78 = vector.extract_strided_slice %77 {offsets = [0, 0], sizes = [16, 32], strides = [1, 1]} : vector<16x96xf32> to vector<16x32xf32>
    %79 = vector.extract_strided_slice %77 {offsets = [0, 32], sizes = [16, 32], strides = [1, 1]} : vector<16x96xf32> to vector<16x32xf32>
    %80 = vector.extract_strided_slice %77 {offsets = [0, 64], sizes = [16, 32], strides = [1, 1]} : vector<16x96xf32> to vector<16x32xf32>
    %81 = tpu.concatenate %78, %78, %78, %78 in 0 : vector<16x32xf32>, vector<16x32xf32>, vector<16x32xf32>, vector<16x32xf32> -> vector<64x32xf32>
    %82 = arith.mulf %81, %61 : vector<64x32xf32>
    %cst_24 = arith.constant dense<0.000000e+00> : vector<64x16xf32>
    %83 = tpu.matmul %82, %79, %cst_24 {dimension_numbers = #tpu.dot_dimension_numbers<[1], [1], [0], [0], [0, 0, 1, 0], [], []>} : vector<64x32xf32>, vector<16x32xf32>, vector<64x16xf32> -> vector<64x16xf32>
    %cst_25 = arith.constant 0.353553385 : f32
    %84 = vector.broadcast %cst_25 : f32 to vector<64x16xf32>
    %85 = arith.mulf %83, %84 : vector<64x16xf32>
    %86 = arith.addf %85, %52 : vector<64x16xf32>
    %cst_26 = arith.constant dense<0xFF800000> : vector<64xf32>
    %87 = vector.multi_reduction <maximumf>, %86, %cst_26 [1] : vector<64x16xf32> to vector<64xf32>
    %88 = vector.shape_cast %87 : vector<64xf32> to vector<64x1xf32>
    %89 = vector.broadcast %88 : vector<64x1xf32> to vector<64x16xf32>
    %90 = arith.subf %86, %89 : vector<64x16xf32>
    %91 = math.exp %90 : vector<64x16xf32>
    %cst_27 = arith.constant dense<0.000000e+00> : vector<64xf32>
    %92 = vector.multi_reduction <add>, %91, %cst_27 [1] : vector<64x16xf32> to vector<64xf32>
    %93 = vector.shape_cast %92 : vector<64xf32> to vector<64x1xf32>
    %94 = tpu.reciprocal %93 {approx = true} : vector<64x1xf32> -> vector<64x1xf32>
    %95 = vector.broadcast %94 : vector<64x1xf32> to vector<64x16xf32>
    %96 = arith.mulf %91, %95 : vector<64x16xf32>
    %cst_28 = arith.constant dense<0.000000e+00> : vector<64x32xf32>
    %97 = tpu.matmul %96, %80, %cst_28 {dimension_numbers = #tpu.dot_dimension_numbers<[1], [0], [0], [1], [0, 0, 1, 1], [], []>} : vector<64x16xf32>, vector<16x32xf32>, vector<64x32xf32> -> vector<64x32xf32>
    %98 = arith.mulf %97, %61 : vector<64x32xf32>
    %99 = vector.extract_strided_slice %98 {offsets = [0, 0], sizes = [16, 32], strides = [1, 1]} : vector<64x32xf32> to vector<16x32xf32>
    %100 = vector.extract_strided_slice %98 {offsets = [16, 0], sizes = [16, 32], strides = [1, 1]} : vector<64x32xf32> to vector<16x32xf32>
    %101 = arith.addf %99, %100 : vector<16x32xf32>
    %102 = vector.extract_strided_slice %98 {offsets = [32, 0], sizes = [16, 32], strides = [1, 1]} : vector<64x32xf32> to vector<16x32xf32>
    %103 = arith.addf %101, %102 : vector<16x32xf32>
    %104 = vector.extract_strided_slice %98 {offsets = [48, 0], sizes = [16, 32], strides = [1, 1]} : vector<64x32xf32> to vector<16x32xf32>
    %105 = arith.addf %103, %104 : vector<16x32xf32>
    %c0_29 = arith.constant 0 : index
    %c0_30 = arith.constant 0 : index
    %c0_31 = arith.constant 0 : index
    %106 = vector.load %arg6[%c0_29, %c0_30, %c0_31] : memref<3x32x32xbf16, #tpu.memory_space<vmem>>, vector<1x32x32xbf16>
    %107 = vector.shape_cast %106 : vector<1x32x32xbf16> to vector<32x32xbf16>
    %108 = arith.truncf %105 : vector<16x32xf32> to vector<16x32xbf16>
    %cst_32 = arith.constant dense<0.000000e+00> : vector<16x32xf32>
    %109 = tpu.matmul %108, %107, %cst_32 {dimension_numbers = #tpu.dot_dimension_numbers<[1], [0], [0], [1], [0, 0, 1, 1], [], []>} : vector<16x32xbf16>, vector<32x32xbf16>, vector<16x32xf32> -> vector<16x32xf32>
    %110 = arith.addf %36, %109 : vector<16x32xf32>
    %111 = vector.broadcast %65 : vector<1x32xf32> to vector<16x32xf32>
    %112 = arith.addf %110, %111 : vector<16x32xf32>
    %cst_33 = arith.constant dense<0.000000e+00> : vector<16xf32>
    %113 = vector.multi_reduction <add>, %112, %cst_33 [1] : vector<16x32xf32> to vector<16xf32>
    %114 = vector.shape_cast %113 : vector<16xf32> to vector<16x1xf32>
    %cst_34 = arith.constant 3.200000e+01 : f32
    %115 = vector.broadcast %cst_34 : f32 to vector<16x1xf32>
    %116 = arith.divf %114, %115 : vector<16x1xf32>
    %117 = vector.broadcast %116 : vector<16x1xf32> to vector<16x32xf32>
    %118 = arith.subf %112, %117 : vector<16x32xf32>
    %119 = arith.mulf %118, %118 : vector<16x32xf32>
    %cst_35 = arith.constant dense<0.000000e+00> : vector<16xf32>
    %120 = vector.multi_reduction <add>, %119, %cst_35 [1] : vector<16x32xf32> to vector<16xf32>
    %121 = vector.shape_cast %120 : vector<16xf32> to vector<16x1xf32>
    %cst_36 = arith.constant 3.200000e+01 : f32
    %122 = vector.broadcast %cst_36 : f32 to vector<16x1xf32>
    %123 = arith.divf %121, %122 : vector<16x1xf32>
    %124 = vector.broadcast %116 : vector<16x1xf32> to vector<16x32xf32>
    %125 = arith.subf %112, %124 : vector<16x32xf32>
    %cst_37 = arith.constant 9.99999996E-13 : f32
    %126 = vector.broadcast %cst_37 : f32 to vector<16x1xf32>
    %127 = arith.addf %123, %126 : vector<16x1xf32>
    %128 = math.rsqrt %127 : vector<16x1xf32>
    %129 = vector.broadcast %128 : vector<16x1xf32> to vector<16x32xf32>
    %130 = arith.mulf %125, %129 : vector<16x32xf32>
    %131 = vector.broadcast %66 : vector<1x32xf32> to vector<16x32xf32>
    %132 = arith.mulf %130, %131 : vector<16x32xf32>
    %133 = vector.broadcast %67 : vector<1x32xf32> to vector<16x32xf32>
    %134 = arith.addf %132, %133 : vector<16x32xf32>
    %c0_38 = arith.constant 0 : index
    %c0_39 = arith.constant 0 : index
    %c0_40 = arith.constant 0 : index
    %135 = vector.load %arg7[%c0_38, %c0_39, %c0_40] : memref<2x32x64xbf16, #tpu.memory_space<vmem>>, vector<1x32x64xbf16>
    %136 = vector.shape_cast %135 : vector<1x32x64xbf16> to vector<32x64xbf16>
    %137 = arith.truncf %134 : vector<16x32xf32> to vector<16x32xbf16>
    %cst_41 = arith.constant dense<0.000000e+00> : vector<16x64xf32>
    %138 = tpu.matmul %137, %136, %cst_41 {dimension_numbers = #tpu.dot_dimension_numbers<[1], [0], [0], [1], [0, 0, 1, 1], [], []>} : vector<16x32xbf16>, vector<32x64xbf16>, vector<16x64xf32> -> vector<16x64xf32>
    %139 = vector.broadcast %68 : vector<1x64xf32> to vector<16x64xf32>
    %140 = arith.addf %138, %139 : vector<16x64xf32>
    %141 = arith.mulf %140, %140 : vector<16x64xf32>
    %142 = arith.mulf %140, %141 : vector<16x64xf32>
    %cst_42 = arith.constant 4.471500e-02 : f32
    %143 = vector.broadcast %cst_42 : f32 to vector<16x64xf32>
    %144 = arith.mulf %143, %142 : vector<16x64xf32>
    %145 = arith.addf %140, %144 : vector<16x64xf32>
    %cst_43 = arith.constant 0.797884583 : f32
    %146 = vector.broadcast %cst_43 : f32 to vector<16x64xf32>
    %147 = arith.mulf %146, %145 : vector<16x64xf32>
    %148 = math.tanh %147 : vector<16x64xf32>
    %cst_44 = arith.constant 1.000000e+00 : f32
    %149 = vector.broadcast %cst_44 : f32 to vector<16x64xf32>
    %150 = arith.addf %149, %148 : vector<16x64xf32>
    %cst_45 = arith.constant 5.000000e-01 : f32
    %151 = vector.broadcast %cst_45 : f32 to vector<16x64xf32>
    %152 = arith.mulf %151, %150 : vector<16x64xf32>
    %153 = arith.mulf %140, %152 : vector<16x64xf32>
    %c0_46 = arith.constant 0 : index
    %c0_47 = arith.constant 0 : index
    %c0_48 = arith.constant 0 : index
    %154 = vector.load %arg8[%c0_46, %c0_47, %c0_48] : memref<2x64x32xbf16, #tpu.memory_space<vmem>>, vector<1x64x32xbf16>
    %155 = vector.shape_cast %154 : vector<1x64x32xbf16> to vector<64x32xbf16>
    %156 = arith.truncf %153 : vector<16x64xf32> to vector<16x64xbf16>
    %cst_49 = arith.constant dense<0.000000e+00> : vector<16x32xf32>
    %157 = tpu.matmul %156, %155, %cst_49 {dimension_numbers = #tpu.dot_dimension_numbers<[1], [0], [0], [1], [0, 0, 1, 1], [], []>} : vector<16x64xbf16>, vector<64x32xbf16>, vector<16x32xf32> -> vector<16x32xf32>
    %158 = arith.addf %134, %157 : vector<16x32xf32>
    %159 = vector.broadcast %69 : vector<1x32xf32> to vector<16x32xf32>
    %160 = arith.addf %158, %159 : vector<16x32xf32>
    %cst_50 = arith.constant dense<0.000000e+00> : vector<16xf32>
    %161 = vector.multi_reduction <add>, %160, %cst_50 [1] : vector<16x32xf32> to vector<16xf32>
    %162 = vector.shape_cast %161 : vector<16xf32> to vector<16x1xf32>
    %cst_51 = arith.constant 3.200000e+01 : f32
    %163 = vector.broadcast %cst_51 : f32 to vector<16x1xf32>
    %164 = arith.divf %162, %163 : vector<16x1xf32>
    %165 = vector.broadcast %164 : vector<16x1xf32> to vector<16x32xf32>
    %166 = arith.subf %160, %165 : vector<16x32xf32>
    %167 = arith.mulf %166, %166 : vector<16x32xf32>
    %cst_52 = arith.constant dense<0.000000e+00> : vector<16xf32>
    %168 = vector.multi_reduction <add>, %167, %cst_52 [1] : vector<16x32xf32> to vector<16xf32>
    %169 = vector.shape_cast %168 : vector<16xf32> to vector<16x1xf32>
    %cst_53 = arith.constant 3.200000e+01 : f32
    %170 = vector.broadcast %cst_53 : f32 to vector<16x1xf32>
    %171 = arith.divf %169, %170 : vector<16x1xf32>
    %172 = vector.broadcast %164 : vector<16x1xf32> to vector<16x32xf32>
    %173 = arith.subf %160, %172 : vector<16x32xf32>
    %cst_54 = arith.constant 9.99999996E-13 : f32
    %174 = vector.broadcast %cst_54 : f32 to vector<16x1xf32>
    %175 = arith.addf %171, %174 : vector<16x1xf32>
    %176 = math.rsqrt %175 : vector<16x1xf32>
    %177 = vector.broadcast %176 : vector<16x1xf32> to vector<16x32xf32>
    %178 = arith.mulf %173, %177 : vector<16x32xf32>
    %179 = vector.broadcast %70 : vector<1x32xf32> to vector<16x32xf32>
    %180 = arith.mulf %178, %179 : vector<16x32xf32>
    %181 = vector.broadcast %71 : vector<1x32xf32> to vector<16x32xf32>
    %182 = arith.addf %180, %181 : vector<16x32xf32>
    %c1 = arith.constant 1 : index
    %c0_55 = arith.constant 0 : index
    %c0_56 = arith.constant 0 : index
    %183 = vector.load %arg4[%c1, %c0_55, %c0_56] : memref<2x8x128xf32, #tpu.memory_space<vmem>>, vector<1x8x128xf32>
    %184 = vector.shape_cast %183 : vector<1x8x128xf32> to vector<8x128xf32>
    %185 = vector.extract_strided_slice %184 {offsets = [0, 0], sizes = [1, 96], strides = [1, 1]} : vector<8x128xf32> to vector<1x96xf32>
    %186 = vector.extract_strided_slice %184 {offsets = [1, 0], sizes = [1, 32], strides = [1, 1]} : vector<8x128xf32> to vector<1x32xf32>
    %187 = vector.extract_strided_slice %184 {offsets = [2, 0], sizes = [1, 32], strides = [1, 1]} : vector<8x128xf32> to vector<1x32xf32>
    %188 = vector.extract_strided_slice %184 {offsets = [3, 0], sizes = [1, 32], strides = [1, 1]} : vector<8x128xf32> to vector<1x32xf32>
    %189 = vector.extract_strided_slice %184 {offsets = [4, 0], sizes = [1, 64], strides = [1, 1]} : vector<8x128xf32> to vector<1x64xf32>
    %190 = vector.extract_strided_slice %184 {offsets = [5, 0], sizes = [1, 32], strides = [1, 1]} : vector<8x128xf32> to vector<1x32xf32>
    %191 = vector.extract_strided_slice %184 {offsets = [6, 0], sizes = [1, 32], strides = [1, 1]} : vector<8x128xf32> to vector<1x32xf32>
    %192 = vector.extract_strided_slice %184 {offsets = [7, 0], sizes = [1, 32], strides = [1, 1]} : vector<8x128xf32> to vector<1x32xf32>
    %c1_57 = arith.constant 1 : index
    %c0_58 = arith.constant 0 : index
    %c0_59 = arith.constant 0 : index
    %193 = vector.load %arg5[%c1_57, %c0_58, %c0_59] : memref<2x32x96xbf16, #tpu.memory_space<vmem>>, vector<1x32x96xbf16>
    %194 = vector.shape_cast %193 : vector<1x32x96xbf16> to vector<32x96xbf16>
    %195 = arith.truncf %182 : vector<16x32xf32> to vector<16x32xbf16>
    %cst_60 = arith.constant dense<0.000000e+00> : vector<16x96xf32>
    %196 = tpu.matmul %195, %194, %cst_60 {dimension_numbers = #tpu.dot_dimension_numbers<[1], [0], [0], [1], [0, 0, 1, 1], [], []>} : vector<16x32xbf16>, vector<32x96xbf16>, vector<16x96xf32> -> vector<16x96xf32>
    %197 = vector.broadcast %185 : vector<1x96xf32> to vector<16x96xf32>
    %198 = arith.addf %196, %197 : vector<16x96xf32>
    %199 = vector.extract_strided_slice %198 {offsets = [0, 0], sizes = [16, 32], strides = [1, 1]} : vector<16x96xf32> to vector<16x32xf32>
    %200 = vector.extract_strided_slice %198 {offsets = [0, 32], sizes = [16, 32], strides = [1, 1]} : vector<16x96xf32> to vector<16x32xf32>
    %201 = vector.extract_strided_slice %198 {offsets = [0, 64], sizes = [16, 32], strides = [1, 1]} : vector<16x96xf32> to vector<16x32xf32>
    %202 = tpu.concatenate %199, %199, %199, %199 in 0 : vector<16x32xf32>, vector<16x32xf32>, vector<16x32xf32>, vector<16x32xf32> -> vector<64x32xf32>
    %203 = arith.mulf %202, %61 : vector<64x32xf32>
    %cst_61 = arith.constant dense<0.000000e+00> : vector<64x16xf32>
    %204 = tpu.matmul %203, %200, %cst_61 {dimension_numbers = #tpu.dot_dimension_numbers<[1], [1], [0], [0], [0, 0, 1, 0], [], []>} : vector<64x32xf32>, vector<16x32xf32>, vector<64x16xf32> -> vector<64x16xf32>
    %cst_62 = arith.constant 0.353553385 : f32
    %205 = vector.broadcast %cst_62 : f32 to vector<64x16xf32>
    %206 = arith.mulf %204, %205 : vector<64x16xf32>
    %207 = arith.addf %206, %52 : vector<64x16xf32>
    %cst_63 = arith.constant dense<0xFF800000> : vector<64xf32>
    %208 = vector.multi_reduction <maximumf>, %207, %cst_63 [1] : vector<64x16xf32> to vector<64xf32>
    %209 = vector.shape_cast %208 : vector<64xf32> to vector<64x1xf32>
    %210 = vector.broadcast %209 : vector<64x1xf32> to vector<64x16xf32>
    %211 = arith.subf %207, %210 : vector<64x16xf32>
    %212 = math.exp %211 : vector<64x16xf32>
    %cst_64 = arith.constant dense<0.000000e+00> : vector<64xf32>
    %213 = vector.multi_reduction <add>, %212, %cst_64 [1] : vector<64x16xf32> to vector<64xf32>
    %214 = vector.shape_cast %213 : vector<64xf32> to vector<64x1xf32>
    %215 = tpu.reciprocal %214 {approx = true} : vector<64x1xf32> -> vector<64x1xf32>
    %216 = vector.broadcast %215 : vector<64x1xf32> to vector<64x16xf32>
    %217 = arith.mulf %212, %216 : vector<64x16xf32>
    %cst_65 = arith.constant dense<0.000000e+00> : vector<64x32xf32>
    %218 = tpu.matmul %217, %201, %cst_65 {dimension_numbers = #tpu.dot_dimension_numbers<[1], [0], [0], [1], [0, 0, 1, 1], [], []>} : vector<64x16xf32>, vector<16x32xf32>, vector<64x32xf32> -> vector<64x32xf32>
    %219 = arith.mulf %218, %61 : vector<64x32xf32>
    %220 = vector.extract_strided_slice %219 {offsets = [0, 0], sizes = [16, 32], strides = [1, 1]} : vector<64x32xf32> to vector<16x32xf32>
    %221 = vector.extract_strided_slice %219 {offsets = [16, 0], sizes = [16, 32], strides = [1, 1]} : vector<64x32xf32> to vector<16x32xf32>
    %222 = arith.addf %220, %221 : vector<16x32xf32>
    %223 = vector.extract_strided_slice %219 {offsets = [32, 0], sizes = [16, 32], strides = [1, 1]} : vector<64x32xf32> to vector<16x32xf32>
    %224 = arith.addf %222, %223 : vector<16x32xf32>
    %225 = vector.extract_strided_slice %219 {offsets = [48, 0], sizes = [16, 32], strides = [1, 1]} : vector<64x32xf32> to vector<16x32xf32>
    %226 = arith.addf %224, %225 : vector<16x32xf32>
    %c1_66 = arith.constant 1 : index
    %c0_67 = arith.constant 0 : index
    %c0_68 = arith.constant 0 : index
    %227 = vector.load %arg6[%c1_66, %c0_67, %c0_68] : memref<3x32x32xbf16, #tpu.memory_space<vmem>>, vector<1x32x32xbf16>
    %228 = vector.shape_cast %227 : vector<1x32x32xbf16> to vector<32x32xbf16>
    %229 = arith.truncf %226 : vector<16x32xf32> to vector<16x32xbf16>
    %cst_69 = arith.constant dense<0.000000e+00> : vector<16x32xf32>
    %230 = tpu.matmul %229, %228, %cst_69 {dimension_numbers = #tpu.dot_dimension_numbers<[1], [0], [0], [1], [0, 0, 1, 1], [], []>} : vector<16x32xbf16>, vector<32x32xbf16>, vector<16x32xf32> -> vector<16x32xf32>
    %231 = arith.addf %182, %230 : vector<16x32xf32>
    %232 = vector.broadcast %186 : vector<1x32xf32> to vector<16x32xf32>
    %233 = arith.addf %231, %232 : vector<16x32xf32>
    %cst_70 = arith.constant dense<0.000000e+00> : vector<16xf32>
    %234 = vector.multi_reduction <add>, %233, %cst_70 [1] : vector<16x32xf32> to vector<16xf32>
    %235 = vector.shape_cast %234 : vector<16xf32> to vector<16x1xf32>
    %cst_71 = arith.constant 3.200000e+01 : f32
    %236 = vector.broadcast %cst_71 : f32 to vector<16x1xf32>
    %237 = arith.divf %235, %236 : vector<16x1xf32>
    %238 = vector.broadcast %237 : vector<16x1xf32> to vector<16x32xf32>
    %239 = arith.subf %233, %238 : vector<16x32xf32>
    %240 = arith.mulf %239, %239 : vector<16x32xf32>
    %cst_72 = arith.constant dense<0.000000e+00> : vector<16xf32>
    %241 = vector.multi_reduction <add>, %240, %cst_72 [1] : vector<16x32xf32> to vector<16xf32>
    %242 = vector.shape_cast %241 : vector<16xf32> to vector<16x1xf32>
    %cst_73 = arith.constant 3.200000e+01 : f32
    %243 = vector.broadcast %cst_73 : f32 to vector<16x1xf32>
    %244 = arith.divf %242, %243 : vector<16x1xf32>
    %245 = vector.broadcast %237 : vector<16x1xf32> to vector<16x32xf32>
    %246 = arith.subf %233, %245 : vector<16x32xf32>
    %cst_74 = arith.constant 9.99999996E-13 : f32
    %247 = vector.broadcast %cst_74 : f32 to vector<16x1xf32>
    %248 = arith.addf %244, %247 : vector<16x1xf32>
    %249 = math.rsqrt %248 : vector<16x1xf32>
    %250 = vector.broadcast %249 : vector<16x1xf32> to vector<16x32xf32>
    %251 = arith.mulf %246, %250 : vector<16x32xf32>
    %252 = vector.broadcast %187 : vector<1x32xf32> to vector<16x32xf32>
    %253 = arith.mulf %251, %252 : vector<16x32xf32>
    %254 = vector.broadcast %188 : vector<1x32xf32> to vector<16x32xf32>
    %255 = arith.addf %253, %254 : vector<16x32xf32>
    %c1_75 = arith.constant 1 : index
    %c0_76 = arith.constant 0 : index
    %c0_77 = arith.constant 0 : index
    %256 = vector.load %arg7[%c1_75, %c0_76, %c0_77] : memref<2x32x64xbf16, #tpu.memory_space<vmem>>, vector<1x32x64xbf16>
    %257 = vector.shape_cast %256 : vector<1x32x64xbf16> to vector<32x64xbf16>
    %258 = arith.truncf %255 : vector<16x32xf32> to vector<16x32xbf16>
    %cst_78 = arith.constant dense<0.000000e+00> : vector<16x64xf32>
    %259 = tpu.matmul %258, %257, %cst_78 {dimension_numbers = #tpu.dot_dimension_numbers<[1], [0], [0], [1], [0, 0, 1, 1], [], []>} : vector<16x32xbf16>, vector<32x64xbf16>, vector<16x64xf32> -> vector<16x64xf32>
    %260 = vector.broadcast %189 : vector<1x64xf32> to vector<16x64xf32>
    %261 = arith.addf %259, %260 : vector<16x64xf32>
    %262 = arith.mulf %261, %261 : vector<16x64xf32>
    %263 = arith.mulf %261, %262 : vector<16x64xf32>
    %cst_79 = arith.constant 4.471500e-02 : f32
    %264 = vector.broadcast %cst_79 : f32 to vector<16x64xf32>
    %265 = arith.mulf %264, %263 : vector<16x64xf32>
    %266 = arith.addf %261, %265 : vector<16x64xf32>
    %cst_80 = arith.constant 0.797884583 : f32
    %267 = vector.broadcast %cst_80 : f32 to vector<16x64xf32>
    %268 = arith.mulf %267, %266 : vector<16x64xf32>
    %269 = math.tanh %268 : vector<16x64xf32>
    %cst_81 = arith.constant 1.000000e+00 : f32
    %270 = vector.broadcast %cst_81 : f32 to vector<16x64xf32>
    %271 = arith.addf %270, %269 : vector<16x64xf32>
    %cst_82 = arith.constant 5.000000e-01 : f32
    %272 = vector.broadcast %cst_82 : f32 to vector<16x64xf32>
    %273 = arith.mulf %272, %271 : vector<16x64xf32>
    %274 = arith.mulf %261, %273 : vector<16x64xf32>
    %c1_83 = arith.constant 1 : index
    %c0_84 = arith.constant 0 : index
    %c0_85 = arith.constant 0 : index
    %275 = vector.load %arg8[%c1_83, %c0_84, %c0_85] : memref<2x64x32xbf16, #tpu.memory_space<vmem>>, vector<1x64x32xbf16>
    %276 = vector.shape_cast %275 : vector<1x64x32xbf16> to vector<64x32xbf16>
    %277 = arith.truncf %274 : vector<16x64xf32> to vector<16x64xbf16>
    %cst_86 = arith.constant dense<0.000000e+00> : vector<16x32xf32>
    %278 = tpu.matmul %277, %276, %cst_86 {dimension_numbers = #tpu.dot_dimension_numbers<[1], [0], [0], [1], [0, 0, 1, 1], [], []>} : vector<16x64xbf16>, vector<64x32xbf16>, vector<16x32xf32> -> vector<16x32xf32>
    %279 = arith.addf %255, %278 : vector<16x32xf32>
    %280 = vector.broadcast %190 : vector<1x32xf32> to vector<16x32xf32>
    %281 = arith.addf %279, %280 : vector<16x32xf32>
    %cst_87 = arith.constant dense<0.000000e+00> : vector<16xf32>
    %282 = vector.multi_reduction <add>, %281, %cst_87 [1] : vector<16x32xf32> to vector<16xf32>
    %283 = vector.shape_cast %282 : vector<16xf32> to vector<16x1xf32>
    %cst_88 = arith.constant 3.200000e+01 : f32
    %284 = vector.broadcast %cst_88 : f32 to vector<16x1xf32>
    %285 = arith.divf %283, %284 : vector<16x1xf32>
    %286 = vector.broadcast %285 : vector<16x1xf32> to vector<16x32xf32>
    %287 = arith.subf %281, %286 : vector<16x32xf32>
    %288 = arith.mulf %287, %287 : vector<16x32xf32>
    %cst_89 = arith.constant dense<0.000000e+00> : vector<16xf32>
    %289 = vector.multi_reduction <add>, %288, %cst_89 [1] : vector<16x32xf32> to vector<16xf32>
    %290 = vector.shape_cast %289 : vector<16xf32> to vector<16x1xf32>
    %cst_90 = arith.constant 3.200000e+01 : f32
    %291 = vector.broadcast %cst_90 : f32 to vector<16x1xf32>
    %292 = arith.divf %290, %291 : vector<16x1xf32>
    %293 = vector.broadcast %285 : vector<16x1xf32> to vector<16x32xf32>
    %294 = arith.subf %281, %293 : vector<16x32xf32>
    %cst_91 = arith.constant 9.99999996E-13 : f32
    %295 = vector.broadcast %cst_91 : f32 to vector<16x1xf32>
    %296 = arith.addf %292, %295 : vector<16x1xf32>
    %297 = math.rsqrt %296 : vector<16x1xf32>
    %298 = vector.broadcast %297 : vector<16x1xf32> to vector<16x32xf32>
    %299 = arith.mulf %294, %298 : vector<16x32xf32>
    %300 = vector.broadcast %191 : vector<1x32xf32> to vector<16x32xf32>
    %301 = arith.mulf %299, %300 : vector<16x32xf32>
    %302 = vector.broadcast %192 : vector<1x32xf32> to vector<16x32xf32>
    %303 = arith.addf %301, %302 : vector<16x32xf32>
    %304 = vector.extract_strided_slice %303 {offsets = [0, 0], sizes = [1, 32], strides = [1, 1]} : vector<16x32xf32> to vector<1x32xf32>
    %305 = vector.extract_strided_slice %303 {offsets = [8, 0], sizes = [1, 32], strides = [1, 1]} : vector<16x32xf32> to vector<1x32xf32>
    %306 = tpu.concatenate %304, %305 in 0 : vector<1x32xf32>, vector<1x32xf32> -> vector<2x32xf32>
    %c2 = arith.constant 2 : index
    %c0_92 = arith.constant 0 : index
    %c0_93 = arith.constant 0 : index
    %307 = vector.load %arg6[%c2, %c0_92, %c0_93] : memref<3x32x32xbf16, #tpu.memory_space<vmem>>, vector<1x32x32xbf16>
    %308 = vector.shape_cast %307 : vector<1x32x32xbf16> to vector<32x32xbf16>
    %309 = arith.truncf %306 : vector<2x32xf32> to vector<2x32xbf16>
    %cst_94 = arith.constant dense<0.000000e+00> : vector<2x32xf32>
    %310 = tpu.matmul %309, %308, %cst_94 {dimension_numbers = #tpu.dot_dimension_numbers<[1], [0], [0], [1], [0, 0, 1, 1], [], []>} : vector<2x32xbf16>, vector<32x32xbf16>, vector<2x32xf32> -> vector<2x32xf32>
    %311 = vector.broadcast %4 : vector<1x32xf32> to vector<2x32xf32>
    %312 = arith.addf %310, %311 : vector<2x32xf32>
    %313 = math.tanh %312 : vector<2x32xf32>
    %314 = math.tanh %313 : vector<2x32xf32>
    %c0_95 = arith.constant 0 : index
    %c0_96 = arith.constant 0 : index
    %315 = vector.load %arg9[%c0_95, %c0_96] : memref<2x32xf32, #tpu.memory_space<vmem>>, vector<2x32xf32>
    tpu.vector_store %arg9[%c0_95, %c0_96], %314 {strides = array<i32>} : memref<2x32xf32, #tpu.memory_space<vmem>>, vector<2x32xf32>,
    return
  }
}

</mosaic_0001>

<llo_original>
// kernel: tpu_custom_call.1
$region0: #{tpu_custom_call.1}
  #allocation0 [shape = 'u32[]', space=smem, size = 0x4, offset = 0x4, fixed_abs, tag = 'smem constant byte address 0x4 - core index']
  #allocation1 [shape = 'u32[72,128]{1,0:T(1,128)}', space=vmem, size = 0x9000, scoped, tag = 'internal scratch']
  %s0 = inlined_call_operand.vmem [shape: s32[16,1], index: 0, kind: input, shape index: {}]
  %s1 = inlined_call_operand.vmem [shape: f32[1,16], index: 1, kind: input, shape index: {}]
  %s2 = inlined_call_operand.vmem [shape: f32[128,32], index: 2, kind: input, shape index: {}]
  %s3 = inlined_call_operand.vmem [shape: f32[24,128], index: 3, kind: input, shape index: {}]
  %s4 = inlined_call_operand.vmem [shape: f32[2,8,128], index: 4, kind: input, shape index: {}]
  %s5 = inlined_call_operand.vmem [shape: bf16[2,32,96], index: 5, kind: input, shape index: {}]
  %s6 = inlined_call_operand.vmem [shape: bf16[3,32,32], index: 6, kind: input, shape index: {}]
  %s7 = inlined_call_operand.vmem [shape: bf16[2,32,64], index: 7, kind: input, shape index: {}]
  %s8 = inlined_call_operand.vmem [shape: bf16[2,64,32], index: 8, kind: input, shape index: {}]
  %s9 = inlined_call_operand.hbm [shape: f32[2,32], index: 9, kind: output, shape index: {}]
  %s10 = sld [smem:[#allocation0]]
  $region46: #{tpu_custom_call.1} parent=0
    _
  %s12 = ssub.s32 1, %s10
  %s13 = scalar_select 0, %s12, %s10
  $region1: #{tpu_custom_call.1} parent=0
    #allocation2 [shape = 'u8[1024]{0}', space=vmem, size = 0x400, scoped, tag = 'output window, operand 0, single buffered']
    #allocation3 [shape = 's32[1]{0}', space=sflag, size = 0x4, scoped, tag = 'scoped memory for tpu_custom_call.1']
    %14 = vsyncpa [#allocation3], 0
    // Predicated region
    $region2: #{tpu_custom_call.1} parent=1 // pred_check
      _
    $region3: #{tpu_custom_call.1} parent=1 // pred_check_branch
      %16 = sbr.rel (0) target = $region5
    $region4: #{tpu_custom_call.1} parent=1 // pred_region
      _
    $region5: #{tpu_custom_call.1} parent=1 // pred_fallthru
      _
    // Predicated region
    $region6: #{tpu_custom_call.1} parent=1 // pred_check
      _
    $region7: #{tpu_custom_call.1} parent=1 // pred_check_branch
      %18 = sbr.rel (0) target = $region9
    $region8: #{tpu_custom_call.1} parent=1 // pred_region
      _
    $region9: #{tpu_custom_call.1} parent=1 // pred_fallthru
      _
    // Predicated region
    $region10: #{tpu_custom_call.1} parent=1 // pred_check
      _
    $region11: #{tpu_custom_call.1} parent=1 // pred_check_branch
      %20 = sbr.rel (0) target = $region13
    $region12: #{tpu_custom_call.1} parent=1 // pred_region
      _
    $region13: #{tpu_custom_call.1} parent=1 // pred_fallthru
      _
    // Predicated region
    $region14: #{tpu_custom_call.1} parent=1 // pred_check
      _
    $region15: #{tpu_custom_call.1} parent=1 // pred_check_branch
      %22 = sbr.rel (0) target = $region17
    $region16: #{tpu_custom_call.1} parent=1 // pred_region
      _
    $region17: #{tpu_custom_call.1} parent=1 // pred_fallthru
      _
    // Predicated region
    $region18: #{tpu_custom_call.1} parent=1 // pred_check
      _
    $region19: #{tpu_custom_call.1} parent=1 // pred_check_branch
      %24 = sbr.rel (0) target = $region21
    $region20: #{tpu_custom_call.1} parent=1 // pred_region
      _
    $region21: #{tpu_custom_call.1} parent=1 // pred_fallthru
      _
    // Predicated region
    $region22: #{tpu_custom_call.1} parent=1 // pred_check
      _
    $region23: #{tpu_custom_call.1} parent=1 // pred_check_branch
      %26 = sbr.rel (0) target = $region25
    $region24: #{tpu_custom_call.1} parent=1 // pred_region
      _
    $region25: #{tpu_custom_call.1} parent=1 // pred_fallthru
      _
    // Predicated region
    $region26: #{tpu_custom_call.1} parent=1 // pred_check
      _
    $region27: #{tpu_custom_call.1} parent=1 // pred_check_branch
      %28 = sbr.rel (0) target = $region29
    $region28: #{tpu_custom_call.1} parent=1 // pred_region
      _
    $region29: #{tpu_custom_call.1} parent=1 // pred_fallthru
      _
    // Predicated region
    $region30: #{tpu_custom_call.1} parent=1 // pred_check
      _
    $region31: #{tpu_custom_call.1} parent=1 // pred_check_branch
      %30 = sbr.rel (0) target = $region33
    $region32: #{tpu_custom_call.1} parent=1 // pred_region
      _
    $region33: #{tpu_custom_call.1} parent=1 // pred_fallthru
      _
    // Predicated region
    $region34: #{tpu_custom_call.1} parent=1 // pred_check
      _
    $region35: #{tpu_custom_call.1} parent=1 // pred_check_branch
      %32 = sbr.rel (0) target = $region37
    $region36: #{tpu_custom_call.1} parent=1 // pred_region
      _
    $region37: #{tpu_custom_call.1} parent=1 // pred_fallthru
      _
    %v34 = vld [vmem:[%s3] sm:$0xff]
    %v35 = vld [vmem:[%s3 + $0x10] sm:$0xff]
    %v36 = vld [vmem:[%s0] sm:$0xff]
    %v37 = vld [vmem:[%s0 + $0x8] sm:$0xff]
    %v38 = vlaneseq
    %v39 = vand.u32 %v38, 127
    %40 = vset.pattern.permute.xlu0 0
    %41 = vperm.xlu0 %40, %v36
    %v42 = vpop.permute.xlu0 %41
    %43 = vset.pattern.permute.xlu0 0
    %44 = vperm.xlu0 %43, %v37
    %v45 = vpop.permute.xlu0 %44
    %vm46 = vcmp.eq.s32.totalorder %v42, %v39
    %vm47 = vcmp.eq.s32.totalorder %v45, %v39
    %v48 = vsel %vm46, 1, 0
    %v49 = vsel %vm47, 1, 0
    %v50 = vcvt.s32.f32 %v48
    %v51 = vcvt.s32.f32 %v49
    %v52 = vld [vmem:[%s2] sm:$0xff]
    %v53 = vld [vmem:[%s2 + $0x8] sm:$0xff]
    %v54 = vld [vmem:[%s2 + $0x10] sm:$0xff]
    %v55 = vld [vmem:[%s2 + $0x18] sm:$0xff]
    %v56 = vld [vmem:[%s2 + $0x20] sm:$0xff]
    %v57 = vld [vmem:[%s2 + $0x28] sm:$0xff]
    %v58 = vld [vmem:[%s2 + $0x30] sm:$0xff]
    %v59 = vld [vmem:[%s2 + $0x38] sm:$0xff]
    %v60 = vld [vmem:[%s2 + $0x40] sm:$0xff]
    %v61 = vld [vmem:[%s2 + $0x48] sm:$0xff]
    %v62 = vld [vmem:[%s2 + $0x50] sm:$0xff]
    %v63 = vld [vmem:[%s2 + $0x58] sm:$0xff]
    %v64 = vld [vmem:[%s2 + $0x60] sm:$0xff]
    %v65 = vld [vmem:[%s2 + $0x68] sm:$0xff]
    %v66 = vld [vmem:[%s2 + $0x70] sm:$0xff]
    %v67 = vld [vmem:[%s2 + $0x78] sm:$0xff]
    %68 = vmatpush.msra.mxu0 %v67
    %69 = vmatpush.msra.mxu0 %v66
    %70 = vmatpush.msra.mxu0 %v65
    %71 = vmatpush.msra.mxu0 %v64
    %72 = vmatpush.msra.mxu0 %v63
    %73 = vmatpush.msra.mxu0 %v62
    %74 = vmatpush.msra.mxu0 %v61
    %75 = vmatpush.msra.mxu0 %v60
    %76 = vmatpush.msra.mxu0 %v59
    %77 = vmatpush.msra.mxu0 %v58
    %78 = vmatpush.msra.mxu0 %v57
    %79 = vmatpush.msra.mxu0 %v56
    %80 = vmatpush.msra.mxu0 %v55
    %81 = vmatpush.msra.mxu0 %v54
    %82 = vmatpush.msra.mxu0 %v53
    %83 = vmatpush.msra.mxu0 %v52
    %84 = vmatmul.f32.gmra.mxu0 %v50
    %v85 = vpop.f32.mrf.mxu0
    %v86 = vadd.f32 %v34, %v85
    %87 = vmatmul.f32.gmra.mxu0 %v51
    %v88 = vpop.f32.mrf.mxu0
    %v89 = vadd.f32 %v34, %v88
    %90 = vdwg.mxu0
    %vm91 = vcmask 261120
    %v92 = vsel %vm91, %v86, 0.0
    %93 = vadd.xlane.f32.xlu0 %v92
    %v94 = vpop.xlane.xlu0 %93
    %v95 = vsel %vm91, %v89, 0.0
    %96 = vadd.xlane.f32.xlu0 %v95
    %v97 = vpop.xlane.xlu0 %96
    %v98 = vrcp.pop 32.0
    %v99 = vmul.f32 32.0, %v98
    %v100 = vsub.f32 1.0, %v99
    %v101 = vmul.f32 %v98, %v100
    %v102 = vadd.f32 %v98, %v101
    %vm103 = vweird.f32 %v98
    %v104 = vsel %vm103, %v98, %v102
    %v105 = vmul.f32 %v94, %v104
    %v106 = vmul.f32 %v97, %v104
    %v107 = vsub.f32 %v86, %v105
    %v108 = vsub.f32 %v89, %v106
    %v109 = vmul.f32 %v107, %v107
    %v110 = vmul.f32 %v108, %v108
    %v111 = vsel %vm91, %v109, 0.0
    %112 = vadd.xlane.f32.xlu0 %v111
    %v113 = vpop.xlane.xlu0 %112
    %v114 = vsel %vm91, %v110, 0.0
    %115 = vadd.xlane.f32.xlu0 %v114
    %v116 = vpop.xlane.xlu0 %115
    %v117 = vmul.f32 %v113, %v104
    %v118 = vmul.f32 %v116, %v104
    %v119 = vadd.f32 %v117, 1e-12
    %v120 = vadd.f32 %v118, 1e-12
    %v121 = vrsqrt.pop %v119
    %v122 = vmul.f32 %v121, %v119
    %v123 = vmul.f32 %v122, %v121
    %v124 = vmul.f32 0.5, %v123
    %v125 = vsub.f32 1.5, %v124
    %v126 = vmul.f32 %v121, %v125
    %vm127 = vweird.f32 %v119
    %vm128 = vweird.f32 %v121
    %vm129 = vmor %vm127, %vm128
    %v130 = vsel %vm129, %v121, %v126
    %v131 = vrsqrt.pop %v120
    %v132 = vmul.f32 %v131, %v120
    %v133 = vmul.f32 %v132, %v131
    %v134 = vmul.f32 0.5, %v133
    %v135 = vsub.f32 1.5, %v134
    %v136 = vmul.f32 %v131, %v135
    %vm137 = vweird.f32 %v120
    %vm138 = vweird.f32 %v131
    %vm139 = vmor %vm137, %vm138
    %v140 = vsel %vm139, %v131, %v136
    %v141 = vmul.f32 %v107, %v130
    %v142 = vmul.f32 %v108, %v140
    %v143 = vperm.slane %v35, 0
    %v144 = vmul.f32 %v141, %v143
    %v145 = vmul.f32 %v142, %v143
    %v146 = vperm.slane %v35, 1
    %v147 = vadd.f32 %v144, %v146
    %v148 = vadd.f32 %v145, %v146
    %v149 = vld [vmem:[%s1] sm:$0x1]
    %vm150 = vcmp.gt.f32.partialorder %v149, 0.5
    %v151 = vlaneseq
    %v152 = vshrl.u32 %v151, 7
    %v153 = vadd.s32 %v152, 8
    %v154 = vshra.s32 %v152, 3
    %v155 = vshra.s32 %v153, 3
    %v156 = vshra.s32 %v39, 3
    %vm157 = vcmp.eq.s32.totalorder %v154, %v156
    %vm158 = vcmp.eq.s32.totalorder %v155, %v156
    %v159 = vsel %vm150, 1, 0
    %v160 = vperm.slane %v159, 0
    %vm161 = vcmp.eq.s32.totalorder %v160, 1
    %vm162 = vmand %vm157, %vm161
    %vm163 = vmand %vm158, %vm161
    %v164 = vsel %vm162, 0.0, -10000.0
    %v165 = vsel %vm163, 0.0, -10000.0
    %v166 = vadd.s32 %v152, 16
    %v167 = vadd.s32 %v152, 24
    %v168 = vadd.s32 %v152, 32
    %v169 = vadd.s32 %v152, 40
    %v170 = vadd.s32 %v152, 48
    %v171 = vadd.s32 %v152, 56
    %v172 = vshra.s32 %v152, 4
    %v173 = vshra.s32 %v153, 4
    %v174 = vshra.s32 %v166, 4
    %v175 = vshra.s32 %v167, 4
    %v176 = vshra.s32 %v168, 4
    %v177 = vshra.s32 %v169, 4
    %v178 = vshra.s32 %v170, 4
    %v179 = vshra.s32 %v171, 4
    %vm180 = vcmp.eq.s32.totalorder %v172, %v156
    %vm181 = vcmp.eq.s32.totalorder %v173, %v156
    %vm182 = vcmp.eq.s32.totalorder %v174, %v156
    %vm183 = vcmp.eq.s32.totalorder %v175, %v156
    %vm184 = vcmp.eq.s32.totalorder %v176, %v156
    %vm185 = vcmp.eq.s32.totalorder %v177, %v156
    %vm186 = vcmp.eq.s32.totalorder %v178, %v156
    %vm187 = vcmp.eq.s32.totalorder %v179, %v156
    %v188 = vsel %vm180, 1, 0
    %v189 = vsel %vm181, 1, 0
    %v190 = vsel %vm182, 1, 0
    %v191 = vsel %vm183, 1, 0
    %v192 = vsel %vm184, 1, 0
    %v193 = vsel %vm185, 1, 0
    %v194 = vsel %vm186, 1, 0
    %v195 = vsel %vm187, 1, 0
    %v196 = vcvt.s32.f32 %v188
    %v197 = vcvt.s32.f32 %v189
    %v198 = vcvt.s32.f32 %v190
    %v199 = vcvt.s32.f32 %v191
    %v200 = vcvt.s32.f32 %v192
    %v201 = vcvt.s32.f32 %v193
    %v202 = vcvt.s32.f32 %v194
    %v203 = vcvt.s32.f32 %v195
    %v204 = vld [vmem:[%s4] sm:$0xff]
    %v205 = vld [vmem:[%s5] sm:$0xf]
    %v206 = vld [vmem:[%s5 + $0x4] sm:$0xf]
    %v207 = vld [vmem:[%s5 + $0x8] sm:$0xf]
    %v208 = vld [vmem:[%s5 + $0xc] sm:$0xf]
    %v209 = vpack.c.bf16 %v148, %v147
    %v210 = vperm.slane %v204, 0
    %v215 = vunpack.c.l.b16 %v205
    %v216 = vunpack.c.l.b16 %v206
    %v217 = vunpack.c.l.b16 %v207
    %v218 = vunpack.c.l.b16 %v208
    %v219 = vpack.c.b16 %v216, %v215
    %v220 = vpack.c.b16 %v218, %v217
    %v224 = vsel %vm91, %v209, 0
    %226 = vmatpush.bf16.msra.mxu0 0
    %227 = vmatpush.bf16.msra.mxu0 0
    %228 = vmatpush.bf16.msra.mxu0 0
    %229 = vmatpush.bf16.msra.mxu0 0
    %230 = vmatpush.bf16.msra.mxu0 0
    %231 = vmatpush.bf16.msra.mxu0 0
    %232 = vmatpush.bf16.msra.mxu0 %v220
    %233 = vmatpush.bf16.msra.mxu0 %v219
    %234 = vmatmul.bf16.gmra.mxu0 %v224
    %v235 = vpop.f32.mrf.mxu0
    %v236 = vadd.f32 %v210, %v235
    %v237 = vpop.f32.mrf.mxu0
    %v238 = vadd.f32 %v210, %v237
    %239 = vdwg.mxu0
    %v240 = vmul.f32 %v236, %v196
    %v241 = vmul.f32 %v238, %v197
    %v242 = vmul.f32 %v236, %v198
    %v243 = vmul.f32 %v238, %v199
    %v244 = vmul.f32 %v236, %v200
    %v245 = vmul.f32 %v238, %v201
    %v246 = vmul.f32 %v236, %v202
    %v247 = vmul.f32 %v238, %v203
    %250 = vrot.lane.b32.xlu0 %v236, 96
    %v251 = vpop.permute.xlu0 %250
    %252 = vrot.lane.b32.xlu0 %v238, 96
    %v253 = vpop.permute.xlu0 %252
    %v255 = vsel %vm91, %v240, 0
    %v258 = vsel %vm91, %v241, 0
    %v261 = vsel %vm91, %v242, 0
    %v264 = vsel %vm91, %v243, 0
    %v267 = vsel %vm91, %v244, 0
    %v270 = vsel %vm91, %v245, 0
    %v273 = vsel %vm91, %v246, 0
    %v276 = vsel %vm91, %v247, 0
    %v278 = vsel %vm91, %v251, 0
    %v280 = vsel %vm91, %v253, 0
    %282 = vmatpush.xpose.msra.mxu0 0.0
    %283 = vmatpush.xpose.msra.mxu0 0.0
    %284 = vmatpush.xpose.msra.mxu0 0.0
    %285 = vmatpush.xpose.msra.mxu0 0.0
    %286 = vmatpush.xpose.msra.mxu0 0.0
    %287 = vmatpush.xpose.msra.mxu0 0.0
    %288 = vmatpush.xpose.msra.mxu0 0.0
    %289 = vmatpush.xpose.msra.mxu0 0.0
    %290 = vmatpush.xpose.msra.mxu0 0.0
    %291 = vmatpush.xpose.msra.mxu0 0.0
    %292 = vmatpush.xpose.msra.mxu0 0.0
    %293 = vmatpush.xpose.msra.mxu0 0.0
    %294 = vmatpush.xpose.msra.mxu0 0.0
    %295 = vmatpush.xpose.msra.mxu0 0.0
    %296 = vmatpush.xpose.msra.mxu0 %v280
    %297 = vmatpush.xpose.msra.mxu0 %v278
    %298 = vmatmul.f32.gmra.mxu0 %v255
    %v299 = vpop.f32.mrf.mxu0
    %v300 = vadd.f32 0.0, %v299
    %301 = vmatmul.f32.gmra.mxu0 %v258
    %v302 = vpop.f32.mrf.mxu0
    %v303 = vadd.f32 0.0, %v302
    %304 = vmatmul.f32.gmra.mxu0 %v261
    %v305 = vpop.f32.mrf.mxu0
    %v306 = vadd.f32 0.0, %v305
    %307 = vmatmul.f32.gmra.mxu0 %v264
    %v308 = vpop.f32.mrf.mxu0
    %v309 = vadd.f32 0.0, %v308
    %310 = vmatmul.f32.gmra.mxu0 %v267
    %v311 = vpop.f32.mrf.mxu0
    %v312 = vadd.f32 0.0, %v311
    %313 = vmatmul.f32.gmra.mxu0 %v270
    %v314 = vpop.f32.mrf.mxu0
    %v315 = vadd.f32 0.0, %v314
    %316 = vmatmul.f32.gmra.mxu0 %v273
    %v317 = vpop.f32.mrf.mxu0
    %v318 = vadd.f32 0.0, %v317
    %319 = vmatmul.f32.gmra.mxu0 %v276
    %v320 = vpop.f32.mrf.mxu0
    %v321 = vadd.f32 0.0, %v320
    %322 = vdwg.mxu0
    %v323 = vmul.f32 %v300, 0.35355338
    %v324 = vmul.f32 %v303, 0.35355338
    %v325 = vmul.f32 %v306, 0.35355338
    %v326 = vmul.f32 %v309, 0.35355338
    %v327 = vmul.f32 %v312, 0.35355338
    %v328 = vmul.f32 %v315, 0.35355338
    %v329 = vmul.f32 %v318, 0.35355338
    %v330 = vmul.f32 %v321, 0.35355338
    %v331 = vadd.f32 %v323, %v164
    %v332 = vadd.f32 %v324, %v165
    %v333 = vadd.f32 %v325, %v164
    %v334 = vadd.f32 %v326, %v165
    %v335 = vadd.f32 %v327, %v164
    %v336 = vadd.f32 %v328, %v165
    %v337 = vadd.f32 %v329, %v164
    %v338 = vadd.f32 %v330, %v165
    %vm339 = vcmask 130048
    %v340 = vsel %vm339, %v331, -inf
    %341 = vmax.xlane.f32.xlu0 %v340
    %v342 = vpop.xlane.xlu0 %341
    %v343 = vsel %vm339, %v332, -inf
    %344 = vmax.xlane.f32.xlu0 %v343
    %v345 = vpop.xlane.xlu0 %344
    %v346 = vsel %vm339, %v333, -inf
    %347 = vmax.xlane.f32.xlu0 %v346
    %v348 = vpop.xlane.xlu0 %347
    %v349 = vsel %vm339, %v334, -inf
    %350 = vmax.xlane.f32.xlu0 %v349
    %v351 = vpop.xlane.xlu0 %350
    %v352 = vsel %vm339, %v335, -inf
    %353 = vmax.xlane.f32.xlu0 %v352
    %v354 = vpop.xlane.xlu0 %353
    %v355 = vsel %vm339, %v336, -inf
    %356 = vmax.xlane.f32.xlu0 %v355
    %v357 = vpop.xlane.xlu0 %356
    %v358 = vsel %vm339, %v337, -inf
    %359 = vmax.xlane.f32.xlu0 %v358
    %v360 = vpop.xlane.xlu0 %359
    %v361 = vsel %vm339, %v338, -inf
    %362 = vmax.xlane.f32.xlu0 %v361
    %v363 = vpop.xlane.xlu0 %362
    %v364 = vsub.f32 %v331, %v342
    %v365 = vsub.f32 %v332, %v345
    %v366 = vsub.f32 %v333, %v348
    %v367 = vsub.f32 %v334, %v351
    %v368 = vsub.f32 %v335, %v354
    %v369 = vsub.f32 %v336, %v357
    %v370 = vsub.f32 %v337, %v360
    %v371 = vsub.f32 %v338, %v363
    %v372 = vmul.f32 %v364, 1.442695
    %v373 = vpow.pop %v372
    %v374 = vmul.f32 %v365, 1.442695
    %v375 = vpow.pop %v374
    %v376 = vmul.f32 %v366, 1.442695
    %v377 = vpow.pop %v376
    %v378 = vmul.f32 %v367, 1.442695
    %v379 = vpow.pop %v378
    %v380 = vmul.f32 %v368, 1.442695
    %v381 = vpow.pop %v380
    %v382 = vmul.f32 %v369, 1.442695
    %v383 = vpow.pop %v382
    %v384 = vmul.f32 %v370, 1.442695
    %v385 = vpow.pop %v384
    %v386 = vmul.f32 %v371, 1.442695
    %v387 = vpow.pop %v386
    %v388 = vsel %vm339, %v373, 0.0
    %389 = vadd.xlane.f32.xlu0 %v388
    %v390 = vpop.xlane.xlu0 %389
    %v391 = vsel %vm339, %v375, 0.0
    %392 = vadd.xlane.f32.xlu0 %v391
    %v393 = vpop.xlane.xlu0 %392
    %v394 = vsel %vm339, %v377, 0.0
    %395 = vadd.xlane.f32.xlu0 %v394
    %v396 = vpop.xlane.xlu0 %395
    %v397 = vsel %vm339, %v379, 0.0
    %398 = vadd.xlane.f32.xlu0 %v397
    %v399 = vpop.xlane.xlu0 %398
    %v400 = vsel %vm339, %v381, 0.0
    %401 = vadd.xlane.f32.xlu0 %v400
    %v402 = vpop.xlane.xlu0 %401
    %v403 = vsel %vm339, %v383, 0.0
    %404 = vadd.xlane.f32.xlu0 %v403
    %v405 = vpop.xlane.xlu0 %404
    %v406 = vsel %vm339, %v385, 0.0
    %407 = vadd.xlane.f32.xlu0 %v406
    %v408 = vpop.xlane.xlu0 %407
    %v409 = vsel %vm339, %v387, 0.0
    %410 = vadd.xlane.f32.xlu0 %v409
    %v411 = vpop.xlane.xlu0 %410
    %v412 = vrcp.pop %v390
    %v413 = vrcp.pop %v393
    %v414 = vrcp.pop %v396
    %v415 = vrcp.pop %v399
    %v416 = vrcp.pop %v402
    %v417 = vrcp.pop %v405
    %v418 = vrcp.pop %v408
    %v419 = vrcp.pop %v411
    %v420 = vmul.f32 %v373, %v412
    %v421 = vmul.f32 %v375, %v413
    %v422 = vmul.f32 %v377, %v414
    %v423 = vmul.f32 %v379, %v415
    %v424 = vmul.f32 %v381, %v416
    %v425 = vmul.f32 %v383, %v417
    %v426 = vmul.f32 %v385, %v418
    %v427 = vmul.f32 %v387, %v419
    %428 = vrot.lane.b32.xlu0 %v236, 64
    %v429 = vpop.permute.xlu0 %428
    %430 = vrot.lane.b32.xlu0 %v238, 64
    %v431 = vpop.permute.xlu0 %430
    %v435 = vsel %vm339, %v420, 0
    %v438 = vsel %vm339, %v421, 0
    %v441 = vsel %vm339, %v422, 0
    %v444 = vsel %vm339, %v423, 0
    %v447 = vsel %vm339, %v424, 0
    %v450 = vsel %vm339, %v425, 0
    %v453 = vsel %vm339, %v426, 0
    %v456 = vsel %vm339, %v427, 0
    %458 = vmatpush.msra.mxu0 0.0
    %459 = vmatpush.msra.mxu0 0.0
    %460 = vmatpush.msra.mxu0 0.0
    %461 = vmatpush.msra.mxu0 0.0
    %462 = vmatpush.msra.mxu0 0.0
    %463 = vmatpush.msra.mxu0 0.0
    %464 = vmatpush.msra.mxu0 0.0
    %465 = vmatpush.msra.mxu0 0.0
    %466 = vmatpush.msra.mxu0 0.0
    %467 = vmatpush.msra.mxu0 0.0
    %468 = vmatpush.msra.mxu0 0.0
    %469 = vmatpush.msra.mxu0 0.0
    %470 = vmatpush.msra.mxu0 0.0
    %471 = vmatpush.msra.mxu0 0.0
    %472 = vmatpush.msra.mxu0 %v431
    %473 = vmatpush.msra.mxu0 %v429
    %474 = vmatmul.f32.gmra.mxu0 %v435
    %v475 = vpop.f32.mrf.mxu0
    %v476 = vadd.f32 0.0, %v475
    %477 = vmatmul.f32.gmra.mxu0 %v438
    %v478 = vpop.f32.mrf.mxu0
    %v479 = vadd.f32 0.0, %v478
    %480 = vmatmul.f32.gmra.mxu0 %v441
    %v481 = vpop.f32.mrf.mxu0
    %v482 = vadd.f32 0.0, %v481
    %483 = vmatmul.f32.gmra.mxu0 %v444
    %v484 = vpop.f32.mrf.mxu0
    %v485 = vadd.f32 0.0, %v484
    %486 = vmatmul.f32.gmra.mxu0 %v447
    %v487 = vpop.f32.mrf.mxu0
    %v488 = vadd.f32 0.0, %v487
    %489 = vmatmul.f32.gmra.mxu0 %v450
    %v490 = vpop.f32.mrf.mxu0
    %v491 = vadd.f32 0.0, %v490
    %492 = vmatmul.f32.gmra.mxu0 %v453
    %v493 = vpop.f32.mrf.mxu0
    %v494 = vadd.f32 0.0, %v493
    %495 = vmatmul.f32.gmra.mxu0 %v456
    %v496 = vpop.f32.mrf.mxu0
    %v497 = vadd.f32 0.0, %v496
    %498 = vdwg.mxu0
    %v499 = vmul.f32 %v476, %v196
    %v500 = vmul.f32 %v479, %v197
    %v501 = vmul.f32 %v482, %v198
    %v502 = vmul.f32 %v485, %v199
    %v503 = vmul.f32 %v488, %v200
    %v504 = vmul.f32 %v491, %v201
    %v505 = vmul.f32 %v494, %v202
    %v506 = vmul.f32 %v497, %v203
    %v507 = vadd.f32 %v499, %v501
    %v508 = vadd.f32 %v500, %v502
    %v509 = vadd.f32 %v507, %v503
    %v510 = vadd.f32 %v508, %v504
    %v511 = vadd.f32 %v509, %v505
    %v512 = vadd.f32 %v510, %v506
    %v513 = vld [vmem:[%s6] sm:$0xf]
    %v514 = vld [vmem:[%s6 + $0x4] sm:$0xf]
    %v515 = vld [vmem:[%s6 + $0x8] sm:$0xf]
    %v516 = vld [vmem:[%s6 + $0xc] sm:$0xf]
    %v517 = vpack.c.bf16 %v512, %v511
    %v522 = vunpack.c.l.b16 %v513
    %v523 = vunpack.c.l.b16 %v514
    %v524 = vunpack.c.l.b16 %v515
    %v525 = vunpack.c.l.b16 %v516
    %v526 = vpack.c.b16 %v523, %v522
    %v527 = vpack.c.b16 %v525, %v524
    %v531 = vsel %vm91, %v517, 0
    %533 = vmatpush.bf16.msra.mxu0 0
    %534 = vmatpush.bf16.msra.mxu0 0
    %535 = vmatpush.bf16.msra.mxu0 0
    %536 = vmatpush.bf16.msra.mxu0 0
    %537 = vmatpush.bf16.msra.mxu0 0
    %538 = vmatpush.bf16.msra.mxu0 0
    %539 = vmatpush.bf16.msra.mxu0 %v527
    %540 = vmatpush.bf16.msra.mxu0 %v526
    %541 = vmatmul.bf16.gmra.mxu0 %v531
    %v542 = vpop.f32.mrf.mxu0
    %v543 = vadd.f32 0.0, %v542
    %v544 = vpop.f32.mrf.mxu0
    %v545 = vadd.f32 0.0, %v544
    %546 = vdwg.mxu0
    %v547 = vadd.f32 %v147, %v543
    %v548 = vadd.f32 %v148, %v545
    %v549 = vperm.slane %v204, 1
    %v550 = vadd.f32 %v547, %v549
    %v551 = vadd.f32 %v548, %v549
    %v552 = vsel %vm91, %v550, 0.0
    %553 = vadd.xlane.f32.xlu0 %v552
    %v554 = vpop.xlane.xlu0 %553
    %v555 = vsel %vm91, %v551, 0.0
    %556 = vadd.xlane.f32.xlu0 %v555
    %v557 = vpop.xlane.xlu0 %556
    %v558 = vmul.f32 %v554, %v104
    %v559 = vmul.f32 %v557, %v104
    %v560 = vsub.f32 %v550, %v558
    %v561 = vsub.f32 %v551, %v559
    %v562 = vmul.f32 %v560, %v560
    %v563 = vmul.f32 %v561, %v561
    %v564 = vsel %vm91, %v562, 0.0
    %565 = vadd.xlane.f32.xlu0 %v564
    %v566 = vpop.xlane.xlu0 %565
    %v567 = vsel %vm91, %v563, 0.0
    %568 = vadd.xlane.f32.xlu0 %v567
    %v569 = vpop.xlane.xlu0 %568
    %v570 = vmul.f32 %v566, %v104
    %v571 = vmul.f32 %v569, %v104
    %v572 = vadd.f32 %v570, 1e-12
    %v573 = vadd.f32 %v571, 1e-12
    %v574 = vrsqrt.pop %v572
    %v575 = vmul.f32 %v574, %v572
    %v576 = vmul.f32 %v575, %v574
    %v577 = vmul.f32 0.5, %v576
    %v578 = vsub.f32 1.5, %v577
    %v579 = vmul.f32 %v574, %v578
    %vm580 = vweird.f32 %v572
    %vm581 = vweird.f32 %v574
    %vm582 = vmor %vm580, %vm581
    %v583 = vsel %vm582, %v574, %v579
    %v584 = vrsqrt.pop %v573
    %v585 = vmul.f32 %v584, %v573
    %v586 = vmul.f32 %v585, %v584
    %v587 = vmul.f32 0.5, %v586
    %v588 = vsub.f32 1.5, %v587
    %v589 = vmul.f32 %v584, %v588
    %vm590 = vweird.f32 %v573
    %vm591 = vweird.f32 %v584
    %vm592 = vmor %vm590, %vm591
    %v593 = vsel %vm592, %v584, %v589
    %v594 = vmul.f32 %v560, %v583
    %v595 = vmul.f32 %v561, %v593
    %v596 = vperm.slane %v204, 2
    %v597 = vmul.f32 %v594, %v596
    %v598 = vmul.f32 %v595, %v596
    %v599 = vperm.slane %v204, 3
    %v600 = vadd.f32 %v597, %v599
    %v601 = vadd.f32 %v598, %v599
    %v602 = vld [vmem:[%s7] sm:$0xf]
    %v603 = vld [vmem:[%s7 + $0x4] sm:$0xf]
    %v604 = vld [vmem:[%s7 + $0x8] sm:$0xf]
    %v605 = vld [vmem:[%s7 + $0xc] sm:$0xf]
    %v606 = vpack.c.bf16 %v601, %v600
    %v607 = vperm.slane %v204, 4
    %v612 = vunpack.c.l.b16 %v602
    %v613 = vunpack.c.l.b16 %v603
    %v614 = vunpack.c.l.b16 %v604
    %v615 = vunpack.c.l.b16 %v605
    %v616 = vpack.c.b16 %v613, %v612
    %v617 = vpack.c.b16 %v615, %v614
    %v621 = vsel %vm91, %v606, 0
    %623 = vmatpush.bf16.msra.mxu0 0
    %624 = vmatpush.bf16.msra.mxu0 0
    %625 = vmatpush.bf16.msra.mxu0 0
    %626 = vmatpush.bf16.msra.mxu0 0
    %627 = vmatpush.bf16.msra.mxu0 0
    %628 = vmatpush.bf16.msra.mxu0 0
    %629 = vmatpush.bf16.msra.mxu0 %v617
    %630 = vmatpush.bf16.msra.mxu0 %v616
    %631 = vmatmul.bf16.gmra.mxu0 %v621
    %v632 = vpop.f32.mrf.mxu0
    %v633 = vadd.f32 %v607, %v632
    %v634 = vpop.f32.mrf.mxu0
    %v635 = vadd.f32 %v607, %v634
    %636 = vdwg.mxu0
    %v637 = vmul.f32 %v633, %v633
    %v638 = vmul.f32 %v635, %v635
    %v639 = vmul.f32 %v633, %v637
    %v640 = vmul.f32 %v635, %v638
    %v641 = vmul.f32 %v639, 0.044715
    %v642 = vmul.f32 %v640, 0.044715
    %v643 = vadd.f32 %v633, %v641
    %v644 = vadd.f32 %v635, %v642
    %v645 = vmul.f32 %v643, 0.7978846
    %v646 = vmul.f32 %v644, 0.7978846
    %v647 = vtanh.pop %v645
    %v648 = vtanh.pop %v646
    %v649 = vadd.f32 %v647, 1.0
    %v650 = vadd.f32 %v648, 1.0
    %v651 = vmul.f32 %v649, 0.5
    %v652 = vmul.f32 %v650, 0.5
    %v653 = vmul.f32 %v633, %v651
    %v654 = vmul.f32 %v635, %v652
    %v655 = vld [vmem:[%s8] sm:$0xf]
    %v656 = vld [vmem:[%s8 + $0x4] sm:$0xf]
    %v657 = vld [vmem:[%s8 + $0x8] sm:$0xf]
    %v658 = vld [vmem:[%s8 + $0xc] sm:$0xf]
    %v659 = vld [vmem:[%s8 + $0x10] sm:$0xf]
    %v660 = vld [vmem:[%s8 + $0x14] sm:$0xf]
    %v661 = vld [vmem:[%s8 + $0x18] sm:$0xf]
    %v662 = vld [vmem:[%s8 + $0x1c] sm:$0xf]
    %v663 = vpack.c.bf16 %v654, %v653
    %v672 = vunpack.c.l.b16 %v655
    %v673 = vunpack.c.l.b16 %v656
    %v674 = vunpack.c.l.b16 %v657
    %v675 = vunpack.c.l.b16 %v658
    %v676 = vunpack.c.l.b16 %v659
    %v677 = vunpack.c.l.b16 %v660
    %v678 = vunpack.c.l.b16 %v661
    %v679 = vunpack.c.l.b16 %v662
    %v680 = vpack.c.b16 %v673, %v672
    %v681 = vpack.c.b16 %v675, %v674
    %v682 = vpack.c.b16 %v677, %v676
    %v683 = vpack.c.b16 %v679, %v678
    %vm688 = vcmask 523264
    %v690 = vsel %vm688, %v663, 0
    %692 = vmatpush.bf16.msra.mxu0 0
    %693 = vmatpush.bf16.msra.mxu0 0
    %694 = vmatpush.bf16.msra.mxu0 0
    %695 = vmatpush.bf16.msra.mxu0 0
    %696 = vmatpush.bf16.msra.mxu0 %v683
    %697 = vmatpush.bf16.msra.mxu0 %v682
    %698 = vmatpush.bf16.msra.mxu0 %v681
    %699 = vmatpush.bf16.msra.mxu0 %v680
    %700 = vmatmul.bf16.gmra.mxu0 %v690
    %v701 = vpop.f32.mrf.mxu0
    %v702 = vadd.f32 0.0, %v701
    %v703 = vpop.f32.mrf.mxu0
    %v704 = vadd.f32 0.0, %v703
    %705 = vdwg.mxu0
    %v706 = vadd.f32 %v600, %v702
    %v707 = vadd.f32 %v601, %v704
    %v708 = vperm.slane %v204, 5
    %v709 = vadd.f32 %v706, %v708
    %v710 = vadd.f32 %v707, %v708
    %v711 = vsel %vm91, %v709, 0.0
    %712 = vadd.xlane.f32.xlu0 %v711
    %v713 = vpop.xlane.xlu0 %712
    %v714 = vsel %vm91, %v710, 0.0
    %715 = vadd.xlane.f32.xlu0 %v714
    %v716 = vpop.xlane.xlu0 %715
    %v717 = vmul.f32 %v713, %v104
    %v718 = vmul.f32 %v716, %v104
    %v719 = vsub.f32 %v709, %v717
    %v720 = vsub.f32 %v710, %v718
    %v721 = vmul.f32 %v719, %v719
    %v722 = vmul.f32 %v720, %v720
    %v723 = vsel %vm91, %v721, 0.0
    %724 = vadd.xlane.f32.xlu0 %v723
    %v725 = vpop.xlane.xlu0 %724
    %v726 = vsel %vm91, %v722, 0.0
    %727 = vadd.xlane.f32.xlu0 %v726
    %v728 = vpop.xlane.xlu0 %727
    %v729 = vmul.f32 %v725, %v104
    %v730 = vmul.f32 %v728, %v104
    %v731 = vadd.f32 %v729, 1e-12
    %v732 = vadd.f32 %v730, 1e-12
    %v733 = vrsqrt.pop %v731
    %v734 = vmul.f32 %v733, %v731
    %v735 = vmul.f32 %v734, %v733
    %v736 = vmul.f32 0.5, %v735
    %v737 = vsub.f32 1.5, %v736
    %v738 = vmul.f32 %v733, %v737
    %vm739 = vweird.f32 %v731
    %vm740 = vweird.f32 %v733
    %vm741 = vmor %vm739, %vm740
    %v742 = vsel %vm741, %v733, %v738
    %v743 = vrsqrt.pop %v732
    %v744 = vmul.f32 %v743, %v732
    %v745 = vmul.f32 %v744, %v743
    %v746 = vmul.f32 0.5, %v745
    %v747 = vsub.f32 1.5, %v746
    %v748 = vmul.f32 %v743, %v747
    %vm749 = vweird.f32 %v732
    %vm750 = vweird.f32 %v743
    %vm751 = vmor %vm749, %vm750
    %v752 = vsel %vm751, %v743, %v748
    %v753 = vmul.f32 %v719, %v742
    %v754 = vmul.f32 %v720, %v752
    %v755 = vperm.slane %v204, 6
    %v756 = vmul.f32 %v753, %v755
    %v757 = vmul.f32 %v754, %v755
    %v758 = vperm.slane %v204, 7
    %v759 = vadd.f32 %v756, %v758
    %v760 = vadd.f32 %v757, %v758
    %s761 = scalar_lea.vmem %s4, 8
    %v762 = vld [vmem:[%s761] sm:$0xff]
    %s763 = scalar_lea.vmem %s5, 16
    %v764 = vld [vmem:[%s763] sm:$0xf]
    %v765 = vld [vmem:[%s763 + $0x4] sm:$0xf]
    %v766 = vld [vmem:[%s763 + $0x8] sm:$0xf]
    %v767 = vld [vmem:[%s763 + $0xc] sm:$0xf]
    %v768 = vpack.c.bf16 %v760, %v759
    %v769 = vperm.slane %v762, 0
    %v774 = vunpack.c.l.b16 %v764
    %v775 = vunpack.c.l.b16 %v765
    %v776 = vunpack.c.l.b16 %v766
    %v777 = vunpack.c.l.b16 %v767
    %v778 = vpack.c.b16 %v775, %v774
    %v779 = vpack.c.b16 %v777, %v776
    %v783 = vsel %vm91, %v768, 0
    %785 = vmatpush.bf16.msra.mxu0 0
    %786 = vmatpush.bf16.msra.mxu0 0
    %787 = vmatpush.bf16.msra.mxu0 0
    %788 = vmatpush.bf16.msra.mxu0 0
    %789 = vmatpush.bf16.msra.mxu0 0
    %790 = vmatpush.bf16.msra.mxu0 0
    %791 = vmatpush.bf16.msra.mxu0 %v779
    %792 = vmatpush.bf16.msra.mxu0 %v778
    %793 = vmatmul.bf16.gmra.mxu0 %v783
    %v794 = vpop.f32.mrf.mxu0
    %v795 = vadd.f32 %v769, %v794
    %v796 = vpop.f32.mrf.mxu0
    %v797 = vadd.f32 %v769, %v796
    %798 = vdwg.mxu0
    %v799 = vmul.f32 %v795, %v196
    %v800 = vmul.f32 %v797, %v197
    %v801 = vmul.f32 %v795, %v198
    %v802 = vmul.f32 %v797, %v199
    %v803 = vmul.f32 %v795, %v200
    %v804 = vmul.f32 %v797, %v201
    %v805 = vmul.f32 %v795, %v202
    %v806 = vmul.f32 %v797, %v203
    %809 = vrot.lane.b32.xlu0 %v795, 96
    %v810 = vpop.permute.xlu0 %809
    %811 = vrot.lane.b32.xlu0 %v797, 96
    %v812 = vpop.permute.xlu0 %811
    %v814 = vsel %vm91, %v799, 0
    %v817 = vsel %vm91, %v800, 0
    %v820 = vsel %vm91, %v801, 0
    %v823 = vsel %vm91, %v802, 0
    %v826 = vsel %vm91, %v803, 0
    %v829 = vsel %vm91, %v804, 0
    %v832 = vsel %vm91, %v805, 0
    %v835 = vsel %vm91, %v806, 0
    %v837 = vsel %vm91, %v810, 0
    %v839 = vsel %vm91, %v812, 0
    %841 = vmatpush.xpose.msra.mxu0 0.0
    %842 = vmatpush.xpose.msra.mxu0 0.0
    %843 = vmatpush.xpose.msra.mxu0 0.0
    %844 = vmatpush.xpose.msra.mxu0 0.0
    %845 = vmatpush.xpose.msra.mxu0 0.0
    %846 = vmatpush.xpose.msra.mxu0 0.0
    %847 = vmatpush.xpose.msra.mxu0 0.0
    %848 = vmatpush.xpose.msra.mxu0 0.0
    %849 = vmatpush.xpose.msra.mxu0 0.0
    %850 = vmatpush.xpose.msra.mxu0 0.0
    %851 = vmatpush.xpose.msra.mxu0 0.0
    %852 = vmatpush.xpose.msra.mxu0 0.0
    %853 = vmatpush.xpose.msra.mxu0 0.0
    %854 = vmatpush.xpose.msra.mxu0 0.0
    %855 = vmatpush.xpose.msra.mxu0 %v839
    %856 = vmatpush.xpose.msra.mxu0 %v837
    %857 = vmatmul.f32.gmra.mxu0 %v814
    %v858 = vpop.f32.mrf.mxu0
    %v859 = vadd.f32 0.0, %v858
    %860 = vmatmul.f32.gmra.mxu0 %v817
    %v861 = vpop.f32.mrf.mxu0
    %v862 = vadd.f32 0.0, %v861
    %863 = vmatmul.f32.gmra.mxu0 %v820
    %v864 = vpop.f32.mrf.mxu0
    %v865 = vadd.f32 0.0, %v864
    %866 = vmatmul.f32.gmra.mxu0 %v823
    %v867 = vpop.f32.mrf.mxu0
    %v868 = vadd.f32 0.0, %v867
    %869 = vmatmul.f32.gmra.mxu0 %v826
    %v870 = vpop.f32.mrf.mxu0
    %v871 = vadd.f32 0.0, %v870
    %872 = vmatmul.f32.gmra.mxu0 %v829
    %v873 = vpop.f32.mrf.mxu0
    %v874 = vadd.f32 0.0, %v873
    %875 = vmatmul.f32.gmra.mxu0 %v832
    %v876 = vpop.f32.mrf.mxu0
    %v877 = vadd.f32 0.0, %v876
    %878 = vmatmul.f32.gmra.mxu0 %v835
    %v879 = vpop.f32.mrf.mxu0
    %v880 = vadd.f32 0.0, %v879
    %881 = vdwg.mxu0
    %v882 = vmul.f32 %v859, 0.35355338
    %v883 = vmul.f32 %v862, 0.35355338
    %v884 = vmul.f32 %v865, 0.35355338
    %v885 = vmul.f32 %v868, 0.35355338
    %v886 = vmul.f32 %v871, 0.35355338
    %v887 = vmul.f32 %v874, 0.35355338
    %v888 = vmul.f32 %v877, 0.35355338
    %v889 = vmul.f32 %v880, 0.35355338
    %v890 = vadd.f32 %v882, %v164
    %v891 = vadd.f32 %v883, %v165
    %v892 = vadd.f32 %v884, %v164
    %v893 = vadd.f32 %v885, %v165
    %v894 = vadd.f32 %v886, %v164
    %v895 = vadd.f32 %v887, %v165
    %v896 = vadd.f32 %v888, %v164
    %v897 = vadd.f32 %v889, %v165
    %v898 = vsel %vm339, %v890, -inf
    %899 = vmax.xlane.f32.xlu0 %v898
    %v900 = vpop.xlane.xlu0 %899
    %v901 = vsel %vm339, %v891, -inf
    %902 = vmax.xlane.f32.xlu0 %v901
    %v903 = vpop.xlane.xlu0 %902
    %v904 = vsel %vm339, %v892, -inf
    %905 = vmax.xlane.f32.xlu0 %v904
    %v906 = vpop.xlane.xlu0 %905
    %v907 = vsel %vm339, %v893, -inf
    %908 = vmax.xlane.f32.xlu0 %v907
    %v909 = vpop.xlane.xlu0 %908
    %v910 = vsel %vm339, %v894, -inf
    %911 = vmax.xlane.f32.xlu0 %v910
    %v912 = vpop.xlane.xlu0 %911
    %v913 = vsel %vm339, %v895, -inf
    %914 = vmax.xlane.f32.xlu0 %v913
    %v915 = vpop.xlane.xlu0 %914
    %v916 = vsel %vm339, %v896, -inf
    %917 = vmax.xlane.f32.xlu0 %v916
    %v918 = vpop.xlane.xlu0 %917
    %v919 = vsel %vm339, %v897, -inf
    %920 = vmax.xlane.f32.xlu0 %v919
    %v921 = vpop.xlane.xlu0 %920
    %v922 = vsub.f32 %v890, %v900
    %v923 = vsub.f32 %v891, %v903
    %v924 = vsub.f32 %v892, %v906
    %v925 = vsub.f32 %v893, %v909
    %v926 = vsub.f32 %v894, %v912
    %v927 = vsub.f32 %v895, %v915
    %v928 = vsub.f32 %v896, %v918
    %v929 = vsub.f32 %v897, %v921
    %v930 = vmul.f32 %v922, 1.442695
    %v931 = vpow.pop %v930
    %v932 = vmul.f32 %v923, 1.442695
    %v933 = vpow.pop %v932
    %v934 = vmul.f32 %v924, 1.442695
    %v935 = vpow.pop %v934
    %v936 = vmul.f32 %v925, 1.442695
    %v937 = vpow.pop %v936
    %v938 = vmul.f32 %v926, 1.442695
    %v939 = vpow.pop %v938
    %v940 = vmul.f32 %v927, 1.442695
    %v941 = vpow.pop %v940
    %v942 = vmul.f32 %v928, 1.442695
    %v943 = vpow.pop %v942
    %v944 = vmul.f32 %v929, 1.442695
    %v945 = vpow.pop %v944
    %v946 = vsel %vm339, %v931, 0.0
    %947 = vadd.xlane.f32.xlu0 %v946
    %v948 = vpop.xlane.xlu0 %947
    %v949 = vsel %vm339, %v933, 0.0
    %950 = vadd.xlane.f32.xlu0 %v949
    %v951 = vpop.xlane.xlu0 %950
    %v952 = vsel %vm339, %v935, 0.0
    %953 = vadd.xlane.f32.xlu0 %v952
    %v954 = vpop.xlane.xlu0 %953
    %v955 = vsel %vm339, %v937, 0.0
    %956 = vadd.xlane.f32.xlu0 %v955
    %v957 = vpop.xlane.xlu0 %956
    %v958 = vsel %vm339, %v939, 0.0
    %959 = vadd.xlane.f32.xlu0 %v958
    %v960 = vpop.xlane.xlu0 %959
    %v961 = vsel %vm339, %v941, 0.0
    %962 = vadd.xlane.f32.xlu0 %v961
    %v963 = vpop.xlane.xlu0 %962
    %v964 = vsel %vm339, %v943, 0.0
    %965 = vadd.xlane.f32.xlu0 %v964
    %v966 = vpop.xlane.xlu0 %965
    %v967 = vsel %vm339, %v945, 0.0
    %968 = vadd.xlane.f32.xlu0 %v967
    %v969 = vpop.xlane.xlu0 %968
    %v970 = vrcp.pop %v948
    %v971 = vrcp.pop %v951
    %v972 = vrcp.pop %v954
    %v973 = vrcp.pop %v957
    %v974 = vrcp.pop %v960
    %v975 = vrcp.pop %v963
    %v976 = vrcp.pop %v966
    %v977 = vrcp.pop %v969
    %v978 = vmul.f32 %v931, %v970
    %v979 = vmul.f32 %v933, %v971
    %v980 = vmul.f32 %v935, %v972
    %v981 = vmul.f32 %v937, %v973
    %v982 = vmul.f32 %v939, %v974
    %v983 = vmul.f32 %v941, %v975
    %v984 = vmul.f32 %v943, %v976
    %v985 = vmul.f32 %v945, %v977
    %986 = vrot.lane.b32.xlu0 %v795, 64
    %v987 = vpop.permute.xlu0 %986
    %988 = vrot.lane.b32.xlu0 %v797, 64
    %v989 = vpop.permute.xlu0 %988
    %v993 = vsel %vm339, %v978, 0
    %v996 = vsel %vm339, %v979, 0
    %v999 = vsel %vm339, %v980, 0
    %v1002 = vsel %vm339, %v981, 0
    %v1005 = vsel %vm339, %v982, 0
    %v1008 = vsel %vm339, %v983, 0
    %v1011 = vsel %vm339, %v984, 0
    %v1014 = vsel %vm339, %v985, 0
    %1016 = vmatpush.msra.mxu0 0.0
    %1017 = vmatpush.msra.mxu0 0.0
    %1018 = vmatpush.msra.mxu0 0.0
    %1019 = vmatpush.msra.mxu0 0.0
    %1020 = vmatpush.msra.mxu0 0.0
    %1021 = vmatpush.msra.mxu0 0.0
    %1022 = vmatpush.msra.mxu0 0.0
    %1023 = vmatpush.msra.mxu0 0.0
    %1024 = vmatpush.msra.mxu0 0.0
    %1025 = vmatpush.msra.mxu0 0.0
    %1026 = vmatpush.msra.mxu0 0.0
    %1027 = vmatpush.msra.mxu0 0.0
    %1028 = vmatpush.msra.mxu0 0.0
    %1029 = vmatpush.msra.mxu0 0.0
    %1030 = vmatpush.msra.mxu0 %v989
    %1031 = vmatpush.msra.mxu0 %v987
    %1032 = vmatmul.f32.gmra.mxu0 %v993
    %v1033 = vpop.f32.mrf.mxu0
    %v1034 = vadd.f32 0.0, %v1033
    %1035 = vmatmul.f32.gmra.mxu0 %v996
    %v1036 = vpop.f32.mrf.mxu0
    %v1037 = vadd.f32 0.0, %v1036
    %1038 = vmatmul.f32.gmra.mxu0 %v999
    %v1039 = vpop.f32.mrf.mxu0
    %v1040 = vadd.f32 0.0, %v1039
    %1041 = vmatmul.f32.gmra.mxu0 %v1002
    %v1042 = vpop.f32.mrf.mxu0
    %v1043 = vadd.f32 0.0, %v1042
    %1044 = vmatmul.f32.gmra.mxu0 %v1005
    %v1045 = vpop.f32.mrf.mxu0
    %v1046 = vadd.f32 0.0, %v1045
    %1047 = vmatmul.f32.gmra.mxu0 %v1008
    %v1048 = vpop.f32.mrf.mxu0
    %v1049 = vadd.f32 0.0, %v1048
    %1050 = vmatmul.f32.gmra.mxu0 %v1011
    %v1051 = vpop.f32.mrf.mxu0
    %v1052 = vadd.f32 0.0, %v1051
    %1053 = vmatmul.f32.gmra.mxu0 %v1014
    %v1054 = vpop.f32.mrf.mxu0
    %v1055 = vadd.f32 0.0, %v1054
    %1056 = vdwg.mxu0
    %v1057 = vmul.f32 %v1034, %v196
    %v1058 = vmul.f32 %v1037, %v197
    %v1059 = vmul.f32 %v1040, %v198
    %v1060 = vmul.f32 %v1043, %v199
    %v1061 = vmul.f32 %v1046, %v200
    %v1062 = vmul.f32 %v1049, %v201
    %v1063 = vmul.f32 %v1052, %v202
    %v1064 = vmul.f32 %v1055, %v203
    %v1065 = vadd.f32 %v1057, %v1059
    %v1066 = vadd.f32 %v1058, %v1060
    %v1067 = vadd.f32 %v1065, %v1061
    %v1068 = vadd.f32 %v1066, %v1062
    %v1069 = vadd.f32 %v1067, %v1063
    %v1070 = vadd.f32 %v1068, %v1064
    %s1071 = scalar_lea.vmem %s6, 16
    %v1072 = vld [vmem:[%s1071] sm:$0xf]
    %v1073 = vld [vmem:[%s1071 + $0x4] sm:$0xf]
    %v1074 = vld [vmem:[%s1071 + $0x8] sm:$0xf]
    %v1075 = vld [vmem:[%s1071 + $0xc] sm:$0xf]
    %v1076 = vpack.c.bf16 %v1070, %v1069
    %v1081 = vunpack.c.l.b16 %v1072
    %v1082 = vunpack.c.l.b16 %v1073
    %v1083 = vunpack.c.l.b16 %v1074
    %v1084 = vunpack.c.l.b16 %v1075
    %v1085 = vpack.c.b16 %v1082, %v1081
    %v1086 = vpack.c.b16 %v1084, %v1083
    %v1090 = vsel %vm91, %v1076, 0
    %1092 = vmatpush.bf16.msra.mxu0 0
    %1093 = vmatpush.bf16.msra.mxu0 0
    %1094 = vmatpush.bf16.msra.mxu0 0
    %1095 = vmatpush.bf16.msra.mxu0 0
    %1096 = vmatpush.bf16.msra.mxu0 0
    %1097 = vmatpush.bf16.msra.mxu0 0
    %1098 = vmatpush.bf16.msra.mxu0 %v1086
    %1099 = vmatpush.bf16.msra.mxu0 %v1085
    %1100 = vmatmul.bf16.gmra.mxu0 %v1090
    %v1101 = vpop.f32.mrf.mxu0
    %v1102 = vadd.f32 0.0, %v1101
    %v1103 = vpop.f32.mrf.mxu0
    %v1104 = vadd.f32 0.0, %v1103
    %1105 = vdwg.mxu0
    %v1106 = vadd.f32 %v759, %v1102
    %v1107 = vadd.f32 %v760, %v1104
    %v1108 = vperm.slane %v762, 1
    %v1109 = vadd.f32 %v1106, %v1108
    %v1110 = vadd.f32 %v1107, %v1108
    %v1111 = vsel %vm91, %v1109, 0.0
    %1112 = vadd.xlane.f32.xlu0 %v1111
    %v1113 = vpop.xlane.xlu0 %1112
    %v1114 = vsel %vm91, %v1110, 0.0
    %1115 = vadd.xlane.f32.xlu0 %v1114
    %v1116 = vpop.xlane.xlu0 %1115
    %v1117 = vmul.f32 %v1113, %v104
    %v1118 = vmul.f32 %v1116, %v104
    %v1119 = vsub.f32 %v1109, %v1117
    %v1120 = vsub.f32 %v1110, %v1118
    %v1121 = vmul.f32 %v1119, %v1119
    %v1122 = vmul.f32 %v1120, %v1120
    %v1123 = vsel %vm91, %v1121, 0.0
    %1124 = vadd.xlane.f32.xlu0 %v1123
    %v1125 = vpop.xlane.xlu0 %1124
    %v1126 = vsel %vm91, %v1122, 0.0
    %1127 = vadd.xlane.f32.xlu0 %v1126
    %v1128 = vpop.xlane.xlu0 %1127
    %v1129 = vmul.f32 %v1125, %v104
    %v1130 = vmul.f32 %v1128, %v104
    %v1131 = vadd.f32 %v1129, 1e-12
    %v1132 = vadd.f32 %v1130, 1e-12
    %v1133 = vrsqrt.pop %v1131
    %v1134 = vmul.f32 %v1133, %v1131
    %v1135 = vmul.f32 %v1134, %v1133
    %v1136 = vmul.f32 0.5, %v1135
    %v1137 = vsub.f32 1.5, %v1136
    %v1138 = vmul.f32 %v1133, %v1137
    %vm1139 = vweird.f32 %v1131
    %vm1140 = vweird.f32 %v1133
    %vm1141 = vmor %vm1139, %vm1140
    %v1142 = vsel %vm1141, %v1133, %v1138
    %v1143 = vrsqrt.pop %v1132
    %v1144 = vmul.f32 %v1143, %v1132
    %v1145 = vmul.f32 %v1144, %v1143
    %v1146 = vmul.f32 0.5, %v1145
    %v1147 = vsub.f32 1.5, %v1146
    %v1148 = vmul.f32 %v1143, %v1147
    %vm1149 = vweird.f32 %v1132
    %vm1150 = vweird.f32 %v1143
    %vm1151 = vmor %vm1149, %vm1150
    %v1152 = vsel %vm1151, %v1143, %v1148
    %v1153 = vmul.f32 %v1119, %v1142
    %v1154 = vmul.f32 %v1120, %v1152
    %v1155 = vperm.slane %v762, 2
    %v1156 = vmul.f32 %v1153, %v1155
    %v1157 = vmul.f32 %v1154, %v1155
    %v1158 = vperm.slane %v762, 3
    %v1159 = vadd.f32 %v1156, %v1158
    %v1160 = vadd.f32 %v1157, %v1158
    %s1161 = scalar_lea.vmem %s7, 16
    %v1162 = vld [vmem:[%s1161] sm:$0xf]
    %v1163 = vld [vmem:[%s1161 + $0x4] sm:$0xf]
    %v1164 = vld [vmem:[%s1161 + $0x8] sm:$0xf]
    %v1165 = vld [vmem:[%s1161 + $0xc] sm:$0xf]
    %v1166 = vpack.c.bf16 %v1160, %v1159
    %v1167 = vperm.slane %v762, 4
    %v1172 = vunpack.c.l.b16 %v1162
    %v1173 = vunpack.c.l.b16 %v1163
    %v1174 = vunpack.c.l.b16 %v1164
    %v1175 = vunpack.c.l.b16 %v1165
    %v1176 = vpack.c.b16 %v1173, %v1172
    %v1177 = vpack.c.b16 %v1175, %v1174
    %v1181 = vsel %vm91, %v1166, 0
    %1183 = vmatpush.bf16.msra.mxu0 0
    %1184 = vmatpush.bf16.msra.mxu0 0
    %1185 = vmatpush.bf16.msra.mxu0 0
    %1186 = vmatpush.bf16.msra.mxu0 0
    %1187 = vmatpush.bf16.msra.mxu0 0
    %1188 = vmatpush.bf16.msra.mxu0 0
    %1189 = vmatpush.bf16.msra.mxu0 %v1177
    %1190 = vmatpush.bf16.msra.mxu0 %v1176
    %1191 = vmatmul.bf16.gmra.mxu0 %v1181
    %v1192 = vpop.f32.mrf.mxu0
    %v1193 = vadd.f32 %v1167, %v1192
    %v1194 = vpop.f32.mrf.mxu0
    %v1195 = vadd.f32 %v1167, %v1194
    %1196 = vdwg.mxu0
    %v1197 = vmul.f32 %v1193, %v1193
    %v1198 = vmul.f32 %v1195, %v1195
    %v1199 = vmul.f32 %v1193, %v1197
    %v1200 = vmul.f32 %v1195, %v1198
    %v1201 = vmul.f32 %v1199, 0.044715
    %v1202 = vmul.f32 %v1200, 0.044715
    %v1203 = vadd.f32 %v1193, %v1201
    %v1204 = vadd.f32 %v1195, %v1202
    %v1205 = vmul.f32 %v1203, 0.7978846
    %v1206 = vmul.f32 %v1204, 0.7978846
    %v1207 = vtanh.pop %v1205
    %v1208 = vtanh.pop %v1206
    %v1209 = vadd.f32 %v1207, 1.0
    %v1210 = vadd.f32 %v1208, 1.0
    %v1211 = vmul.f32 %v1209, 0.5
    %v1212 = vmul.f32 %v1210, 0.5
    %v1213 = vmul.f32 %v1193, %v1211
    %v1214 = vmul.f32 %v1195, %v1212
    %s1215 = scalar_lea.vmem %s8, 32
    %v1216 = vld [vmem:[%s1215] sm:$0xf]
    %v1217 = vld [vmem:[%s1215 + $0x4] sm:$0xf]
    %v1218 = vld [vmem:[%s1215 + $0x8] sm:$0xf]
    %v1219 = vld [vmem:[%s1215 + $0xc] sm:$0xf]
    %v1220 = vld [vmem:[%s1215 + $0x10] sm:$0xf]
    %v1221 = vld [vmem:[%s1215 + $0x14] sm:$0xf]
    %v1222 = vld [vmem:[%s1215 + $0x18] sm:$0xf]
    %v1223 = vld [vmem:[%s1215 + $0x1c] sm:$0xf]
    %v1224 = vpack.c.bf16 %v1214, %v1213
    %v1233 = vunpack.c.l.b16 %v1216
    %v1234 = vunpack.c.l.b16 %v1217
    %v1235 = vunpack.c.l.b16 %v1218
    %v1236 = vunpack.c.l.b16 %v1219
    %v1237 = vunpack.c.l.b16 %v1220
    %v1238 = vunpack.c.l.b16 %v1221
    %v1239 = vunpack.c.l.b16 %v1222
    %v1240 = vunpack.c.l.b16 %v1223
    %v1241 = vpack.c.b16 %v1234, %v1233
    %v1242 = vpack.c.b16 %v1236, %v1235
    %v1243 = vpack.c.b16 %v1238, %v1237
    %v1244 = vpack.c.b16 %v1240, %v1239
    %v1250 = vsel %vm688, %v1224, 0
    %1252 = vmatpush.bf16.msra.mxu0 0
    %1253 = vmatpush.bf16.msra.mxu0 0
    %1254 = vmatpush.bf16.msra.mxu0 0
    %1255 = vmatpush.bf16.msra.mxu0 0
    %1256 = vmatpush.bf16.msra.mxu0 %v1244
    %1257 = vmatpush.bf16.msra.mxu0 %v1243
    %1258 = vmatpush.bf16.msra.mxu0 %v1242
    %1259 = vmatpush.bf16.msra.mxu0 %v1241
    %1260 = vmatmul.bf16.gmra.mxu0 %v1250
    %v1261 = vpop.f32.mrf.mxu0
    %v1262 = vadd.f32 0.0, %v1261
    %v1263 = vpop.f32.mrf.mxu0
    %v1264 = vadd.f32 0.0, %v1263
    %1265 = vdwg.mxu0
    %v1266 = vadd.f32 %v1159, %v1262
    %v1267 = vadd.f32 %v1160, %v1264
    %v1268 = vperm.slane %v762, 5
    %v1269 = vadd.f32 %v1266, %v1268
    %v1270 = vadd.f32 %v1267, %v1268
    %v1271 = vsel %vm91, %v1269, 0.0
    %1272 = vadd.xlane.f32.xlu0 %v1271
    %v1273 = vpop.xlane.xlu0 %1272
    %v1274 = vsel %vm91, %v1270, 0.0
    %1275 = vadd.xlane.f32.xlu0 %v1274
    %v1276 = vpop.xlane.xlu0 %1275
    %v1277 = vmul.f32 %v1273, %v104
    %v1278 = vmul.f32 %v1276, %v104
    %v1279 = vsub.f32 %v1269, %v1277
    %v1280 = vsub.f32 %v1270, %v1278
    %v1281 = vmul.f32 %v1279, %v1279
    %v1282 = vmul.f32 %v1280, %v1280
    %v1283 = vsel %vm91, %v1281, 0.0
    %1284 = vadd.xlane.f32.xlu0 %v1283
    %v1285 = vpop.xlane.xlu0 %1284
    %v1286 = vsel %vm91, %v1282, 0.0
    %1287 = vadd.xlane.f32.xlu0 %v1286
    %v1288 = vpop.xlane.xlu0 %1287
    %v1289 = vmul.f32 %v1285, %v104
    %v1290 = vmul.f32 %v1288, %v104
    %v1291 = vadd.f32 %v1289, 1e-12
    %v1292 = vadd.f32 %v1290, 1e-12
    %v1293 = vrsqrt.pop %v1291
    %v1294 = vmul.f32 %v1293, %v1291
    %v1295 = vmul.f32 %v1294, %v1293
    %v1296 = vmul.f32 0.5, %v1295
    %v1297 = vsub.f32 1.5, %v1296
    %v1298 = vmul.f32 %v1293, %v1297
    %vm1299 = vweird.f32 %v1291
    %vm1300 = vweird.f32 %v1293
    %vm1301 = vmor %vm1299, %vm1300
    %v1302 = vsel %vm1301, %v1293, %v1298
    %v1303 = vrsqrt.pop %v1292
    %v1304 = vmul.f32 %v1303, %v1292
    %v1305 = vmul.f32 %v1304, %v1303
    %v1306 = vmul.f32 0.5, %v1305
    %v1307 = vsub.f32 1.5, %v1306
    %v1308 = vmul.f32 %v1303, %v1307
    %vm1309 = vweird.f32 %v1292
    %vm1310 = vweird.f32 %v1303
    %vm1311 = vmor %vm1309, %vm1310
    %v1312 = vsel %vm1311, %v1303, %v1308
    %v1313 = vmul.f32 %v1279, %v1302
    %v1314 = vmul.f32 %v1280, %v1312
    %v1315 = vperm.slane %v762, 6
    %v1316 = vmul.f32 %v1313, %v1315
    %v1317 = vmul.f32 %v1314, %v1315
    %v1318 = vperm.slane %v762, 7
    %v1319 = vadd.f32 %v1316, %v1318
    %v1320 = vadd.f32 %v1317, %v1318
    %v1322 = vrot.slane %v1320, 7
    %vm1324 = vcmask 1040384
    %v1325 = vsel %vm1324, %v1319, %v1322
    %s1326 = scalar_lea.vmem %s6, 32
    %v1327 = vld [vmem:[%s1326] sm:$0xf]
    %v1328 = vld [vmem:[%s1326 + $0x4] sm:$0xf]
    %v1329 = vld [vmem:[%s1326 + $0x8] sm:$0xf]
    %v1330 = vld [vmem:[%s1326 + $0xc] sm:$0xf]
    %v1331 = vpack.c.bf16 %v1325, %v1325
    %v1332 = vperm.slane %v35, 2
    %v1337 = vunpack.c.l.b16 %v1327
    %v1338 = vunpack.c.l.b16 %v1328
    %v1339 = vunpack.c.l.b16 %v1329
    %v1340 = vunpack.c.l.b16 %v1330
    %v1341 = vpack.c.b16 %v1338, %v1337
    %v1342 = vpack.c.b16 %v1340, %v1339
    %v1346 = vsel %vm91, %v1331, 0
    %1348 = vmatpush.bf16.msra.mxu0 0
    %1349 = vmatpush.bf16.msra.mxu0 0
    %1350 = vmatpush.bf16.msra.mxu0 0
    %1351 = vmatpush.bf16.msra.mxu0 0
    %1352 = vmatpush.bf16.msra.mxu0 0
    %1353 = vmatpush.bf16.msra.mxu0 0
    %1354 = vmatpush.bf16.msra.mxu0 %v1342
    %1355 = vmatpush.bf16.msra.mxu0 %v1341
    %1356 = vmatmul.bf16.gmra.mxu0 %v1346
    %v1357 = vpop.f32.mrf.mxu0
    %v1358 = vadd.f32 %v1332, %v1357
    %v1359 = vpop.f32.mrf.mxu0
    %1360 = vdwg.mxu0
    %v1361 = vtanh.pop %v1358
    %v1362 = vtanh.pop %v1361
    %vm1363 = vcmask 254976
    %1364 = vst.msk [vmem:[#allocation2] sm:$0x3] %vm1363, %v1362
    // Predicated region
    $region38: #{tpu_custom_call.1} parent=1 // pred_check
      _
    $region39: #{tpu_custom_call.1} parent=1 // pred_check_branch
      %1366 = sbr.rel (0) target = $region41
    $region40: #{tpu_custom_call.1} parent=1 // pred_region
      %1368 = vsyncadd [#allocation3], 0
      %s1370 = sshll.u32 [#allocation2], 4
      %s1371 = int_to_ptr.vmem [resolvable:$true] %s1370
      %s1372 = sshll.u32 %s9, 4
      %s1373 = int_to_ptr.hbm [resolvable:$true] %s1372
      %1375 = dma.vmem_to_hbm [thread:$0]  %s1371, 32, %s1373, [#allocation3]
    $region41: #{tpu_custom_call.1} parent=1 // pred_fallthru
      _
    // Predicated region
    $region42: #{tpu_custom_call.1} parent=1 // pred_check
      _
    $region43: #{tpu_custom_call.1} parent=1 // pred_check_branch
      %1377 = sbr.rel (0) target = $region45
    $region44: #{tpu_custom_call.1} parent=1 // pred_region
      %1379 = dma.done [#allocation3], 32
    $region45: #{tpu_custom_call.1} parent=1 // pred_fallthru
      _
    %1380 = vsyncpa [#allocation3], 1

</llo_original>
